<compile_context>
chip_gen: v6e
topology: v6e:2x2x1
jax: 0.10.0
libtpu: 0.0.40
codegen_flags: <defaults>
</compile_context>

<pallas_src>
import functools
import math

import jax
import jax.numpy as jnp
from jax.experimental import pallas as pl
from jax.experimental.pallas import tpu as pltpu

LN_EPS = 1e-5


def _tf_encoder_kernel(nhead,
                       x_ref, pos_ref,
                       wq_ref, bq_ref, wk_ref, bk_ref, wv_ref, bv_ref,
                       wo_ref, bo_ref,
                       ln1g_ref, ln1b_ref,
                       w1_ref, b1_ref, w2_ref, b2_ref,
                       ln2g_ref, ln2b_ref,
                       wfc_ref, bfc_ref,
                       out_ref):
    """One grid step = one batch sample; full encoder layer + head fused."""
    x = x_ref[0] + pos_ref[...]                       # (S, E)
    S, E = x.shape
    hd = E // nhead
    scale = 1.0 / math.sqrt(hd)

    # --- multi-head self-attention (per-head weights pre-split/stacked) ---
    attn = jnp.zeros((S, E), jnp.float32)
    for h in range(nhead):                            # static unroll, nhead small
        qh = jnp.dot(x, wq_ref[h], preferred_element_type=jnp.float32) + bq_ref[h]
        kh = jnp.dot(x, wk_ref[h], preferred_element_type=jnp.float32) + bk_ref[h]
        vh = jnp.dot(x, wv_ref[h], preferred_element_type=jnp.float32) + bv_ref[h]
        # q @ k^T without an explicit transpose (contract last dims)
        scores = jax.lax.dot_general(
            qh, kh, (((1,), (1,)), ((), ())),
            preferred_element_type=jnp.float32) * scale         # (S, S)
        m = jnp.max(scores, axis=-1, keepdims=True)
        p = jnp.exp(scores - m)
        p = p / jnp.sum(p, axis=-1, keepdims=True)
        ctx = jnp.dot(p, vh, preferred_element_type=jnp.float32)          # (S, hd)
        attn = attn + jnp.dot(ctx, wo_ref[h], preferred_element_type=jnp.float32)
    attn = attn + bo_ref[...]

    # --- residual + LayerNorm 1 (post-norm) ---
    y = x + attn
    mu = jnp.mean(y, axis=-1, keepdims=True)
    var = jnp.mean(jnp.square(y - mu), axis=-1, keepdims=True)
    y = (y - mu) * jax.lax.rsqrt(var + LN_EPS) * ln1g_ref[...] + ln1b_ref[...]

    # --- feed-forward: Linear -> ReLU -> Linear ---
    ff = jnp.dot(y, w1_ref[...], preferred_element_type=jnp.float32) + b1_ref[...]
    ff = jnp.maximum(ff, 0.0)
    ff = jnp.dot(ff, w2_ref[...], preferred_element_type=jnp.float32) + b2_ref[...]

    # --- residual + LayerNorm 2 ---
    z = y + ff
    mu2 = jnp.mean(z, axis=-1, keepdims=True)
    var2 = jnp.mean(jnp.square(z - mu2), axis=-1, keepdims=True)
    z = (z - mu2) * jax.lax.rsqrt(var2 + LN_EPS) * ln2g_ref[...] + ln2b_ref[...]

    # --- mean pool over sequence -> classifier head -> sigmoid ---
    pooled = jnp.mean(z, axis=0, keepdims=True)       # (1, E)
    logits = jnp.dot(pooled, wfc_ref[...],
                     preferred_element_type=jnp.float32) + bfc_ref[...]
    out_ref[0] = jax.nn.sigmoid(logits)               # (1, num_label)


def tf_model_forward(token_ids, params, nhead):
    """token_ids: int32 (batch, seq) with seq == maxlen. Returns (batch, num_label)."""
    emb_table = params["emb"]                         # (vocab+1, E), row 0 = padding
    pos_emb = params["pos_emb"].astype(jnp.float32)   # (maxlen, E)
    batch, seq = token_ids.shape
    E = emb_table.shape[1]
    hd = E // nhead
    ff_dim = params["w1"].shape[0]
    num_label = params["wfc"].shape[0]
    assert seq == pos_emb.shape[0], "TF_model adds pos_emb(range(maxlen)); needs seq == maxlen"

    # Embedding lookup (gather); dropout at inference == identity.
    x_emb = jnp.take(emb_table, token_ids, axis=0).astype(jnp.float32)   # (B, S, E)

    # One-time HBM-side weight prep: transpose + per-head split (no in-kernel .T).
    def split_heads_w(w):      # (E_out, E_in) -> (nhead, E_in, hd)
        return jnp.transpose(w.T.reshape(E, nhead, hd), (1, 0, 2)).astype(jnp.float32)

    def split_heads_b(b):      # (E,) -> (nhead, 1, hd)
        return b.reshape(nhead, hd)[:, None, :].astype(jnp.float32)

    wq_h, wk_h, wv_h = (split_heads_w(params[n]) for n in ("wq", "wk", "wv"))
    bq_h, bk_h, bv_h = (split_heads_b(params[n]) for n in ("bq", "bk", "bv"))
    wo_h = params["wo"].T.reshape(nhead, hd, E).astype(jnp.float32)      # (nhead, hd, E)

    row = lambda a: a.reshape(1, -1).astype(jnp.float32)
    w1_t = params["w1"].T.astype(jnp.float32)      # (E, ff)
    w2_t = params["w2"].T.astype(jnp.float32)      # (ff, E)
    wfc_t = params["wfc"].T.astype(jnp.float32)    # (E, num_label)

    inputs = [
        x_emb, pos_emb,
        wq_h, bq_h, wk_h, bk_h, wv_h, bv_h,
        wo_h, row(params["bo"]),
        row(params["ln1_g"]), row(params["ln1_b"]),
        w1_t, row(params["b1"]), w2_t, row(params["b2"]),
        row(params["ln2_g"]), row(params["ln2_b"]),
        wfc_t, row(params["bfc"]),
    ]

    def const_spec(a):
        nd = a.ndim
        return pl.BlockSpec(a.shape, lambda b, _nd=nd: (0,) * _nd)

    in_specs = ([pl.BlockSpec((1, seq, E), lambda b: (b, 0, 0))]
                + [const_spec(a) for a in inputs[1:]])

    kernel = functools.partial(_tf_encoder_kernel, nhead)

    out = pl.pallas_call(
        kernel,
        out_shape=jax.ShapeDtypeStruct((batch, 1, num_label), jnp.float32),
        grid_spec=pltpu.PrefetchScalarGridSpec(
            num_scalar_prefetch=0,
            grid=(batch,),
            in_specs=in_specs,
            out_specs=pl.BlockSpec((1, 1, num_label), lambda b: (b, 0, 0)),
        ),
        compiler_params=pltpu.CompilerParams(
            dimension_semantics=("parallel",),   # samples are independent
        ),
    )(*inputs)
    return out[:, 0, :]


def make_params(key, vocab, emb_dim, nhead, ff_dim, num_label, maxlen):
    ks = jax.random.split(key, 18)
    uni = lambda k, shape, b: jax.random.uniform(k, shape, jnp.float32, -b, b)
    b_e = 1.0 / math.sqrt(emb_dim)
    b_f = 1.0 / math.sqrt(ff_dim)
    emb = jax.random.normal(ks[0], (vocab + 1, emb_dim), jnp.float32) * 0.1
    emb = emb.at[0].set(0.0)   # padding_idx=0
    return {
        "emb": emb,
        "pos_emb": jax.random.normal(ks[1], (maxlen, emb_dim), jnp.float32) * 0.1,
        "wq": uni(ks[2], (emb_dim, emb_dim), b_e), "bq": uni(ks[3], (emb_dim,), b_e),
        "wk": uni(ks[4], (emb_dim, emb_dim), b_e), "bk": uni(ks[5], (emb_dim,), b_e),
        "wv": uni(ks[6], (emb_dim, emb_dim), b_e), "bv": uni(ks[7], (emb_dim,), b_e),
        "wo": uni(ks[8], (emb_dim, emb_dim), b_e), "bo": uni(ks[9], (emb_dim,), b_e),
        "ln1_g": 1.0 + 0.1 * jax.random.normal(ks[10], (emb_dim,), jnp.float32),
        "ln1_b": 0.1 * jax.random.normal(ks[11], (emb_dim,), jnp.float32),
        "w1": uni(ks[12], (ff_dim, emb_dim), b_e), "b1": uni(ks[13], (ff_dim,), b_e),
        "w2": uni(ks[14], (emb_dim, ff_dim), b_f), "b2": uni(ks[15], (emb_dim,), b_f),
        "ln2_g": 1.0 + 0.1 * jax.random.normal(ks[16], (emb_dim,), jnp.float32),
        "ln2_b": 0.1 * jax.random.normal(ks[17], (emb_dim,), jnp.float32),
        "wfc": uni(ks[2], (num_label, emb_dim), b_e), "bfc": uni(ks[3], (num_label,), b_e),
    }


def reference_forward(token_ids, params, nhead):
    """Pure-JAX reference with the same (assumed) TransformerEncoderLayer semantics."""
    lin = lambda a, w, b: a @ w.T + b
    x = jnp.take(params["emb"], token_ids, axis=0).astype(jnp.float32)   # (B, S, E)
    x = x + params["pos_emb"][None].astype(jnp.float32)
    B, S, E = x.shape
    hd = E // nhead

    def heads(a):
        return a.reshape(B, S, nhead, hd).transpose(0, 2, 1, 3)          # (B, nh, S, hd)

    q = heads(lin(x, params["wq"], params["bq"]))
    k = heads(lin(x, params["wk"], params["bk"]))
    v = heads(lin(x, params["wv"], params["bv"]))
    scores = jnp.einsum("bhqd,bhkd->bhqk", q, k) * (1.0 / math.sqrt(hd))
    p = jax.nn.softmax(scores, axis=-1)
    attn = jnp.einsum("bhqk,bhkd->bhqd", p, v).transpose(0, 2, 1, 3).reshape(B, S, E)
    attn = lin(attn, params["wo"], params["bo"])

    def layernorm(a, g, b):
        mu = a.mean(-1, keepdims=True)
        var = jnp.square(a - mu).mean(-1, keepdims=True)
        return (a - mu) * jax.lax.rsqrt(var + LN_EPS) * g + b

    y = layernorm(x + attn, params["ln1_g"], params["ln1_b"])
    ff = lin(jnp.maximum(lin(y, params["w1"], params["b1"]), 0.0),
             params["w2"], params["b2"])
    z = layernorm(y + ff, params["ln2_g"], params["ln2_b"])
    pooled = z.mean(axis=1)
    return jax.nn.sigmoid(lin(pooled, params["wfc"], params["bfc"]))


if __name__ == "__main__":
    batch, maxlen = 4, 16
    vocab, emb_dim, nhead, ff_dim, num_label = 50, 32, 2, 64, 4

    key = jax.random.PRNGKey(0)
    k_tok, k_par = jax.random.split(key)
    params = make_params(k_par, vocab, emb_dim, nhead, ff_dim, num_label, maxlen)
    token_ids = jax.random.randint(k_tok, (batch, maxlen), 0, vocab + 1, jnp.int32)

    out = tf_model_forward(token_ids, params, nhead)
    out = jax.block_until_ready(out)

    ref = reference_forward(token_ids, params, nhead)
    assert out.shape == (batch, num_label)
    assert jnp.allclose(out, ref, atol=1e-4, rtol=1e-4), (out, ref)

    print("KERNEL_OK")
</pallas_src>

<mosaic_0001>
module attributes {stable_mosaic.version = 11 : i64} {
  func.func @_tf_encoder_kernel(%arg0: i32, %arg1: memref<1x16x32xf32, #tpu.memory_space<vmem>>, %arg2: memref<16x32xf32, #tpu.memory_space<vmem>>, %arg3: memref<2x32x16xf32, #tpu.memory_space<vmem>>, %arg4: memref<2x1x16xf32, #tpu.memory_space<vmem>>, %arg5: memref<2x32x16xf32, #tpu.memory_space<vmem>>, %arg6: memref<2x1x16xf32, #tpu.memory_space<vmem>>, %arg7: memref<2x32x16xf32, #tpu.memory_space<vmem>>, %arg8: memref<2x1x16xf32, #tpu.memory_space<vmem>>, %arg9: memref<2x16x32xf32, #tpu.memory_space<vmem>>, %arg10: memref<1x32xf32, #tpu.memory_space<vmem>>, %arg11: memref<1x32xf32, #tpu.memory_space<vmem>>, %arg12: memref<1x32xf32, #tpu.memory_space<vmem>>, %arg13: memref<32x64xf32, #tpu.memory_space<vmem>>, %arg14: memref<1x64xf32, #tpu.memory_space<vmem>>, %arg15: memref<64x32xf32, #tpu.memory_space<vmem>>, %arg16: memref<1x32xf32, #tpu.memory_space<vmem>>, %arg17: memref<1x32xf32, #tpu.memory_space<vmem>>, %arg18: memref<1x32xf32, #tpu.memory_space<vmem>>, %arg19: memref<32x4xf32, #tpu.memory_space<vmem>>, %arg20: memref<1x4xf32, #tpu.memory_space<vmem>>, %arg21: memref<1x1x4xf32, #tpu.memory_space<vmem>>) attributes {dimension_semantics = [#tpu.dimension_semantics<parallel>], iteration_bounds = array<i64: 4>, scalar_prefetch = 0 : i64, scratch_operands = 0 : i64, tpu.core_type = #tpu.core_type<tc>, window_params = [{transform_indices = @transform_0, window_bounds = array<i64: 1, 16, 32>}, {pipeline_mode = #tpu.pipeline_mode<synchronous>, transform_indices = @transform_1, window_bounds = array<i64: 16, 32>}, {pipeline_mode = #tpu.pipeline_mode<synchronous>, transform_indices = @transform_2, window_bounds = array<i64: 2, 32, 16>}, {pipeline_mode = #tpu.pipeline_mode<synchronous>, transform_indices = @transform_3, window_bounds = array<i64: 2, 1, 16>}, {pipeline_mode = #tpu.pipeline_mode<synchronous>, transform_indices = @transform_4, window_bounds = array<i64: 2, 32, 16>}, {pipeline_mode = #tpu.pipeline_mode<synchronous>, transform_indices = @transform_5, window_bounds = array<i64: 2, 1, 16>}, {pipeline_mode = #tpu.pipeline_mode<synchronous>, transform_indices = @transform_6, window_bounds = array<i64: 2, 32, 16>}, {pipeline_mode = #tpu.pipeline_mode<synchronous>, transform_indices = @transform_7, window_bounds = array<i64: 2, 1, 16>}, {pipeline_mode = #tpu.pipeline_mode<synchronous>, transform_indices = @transform_8, window_bounds = array<i64: 2, 16, 32>}, {pipeline_mode = #tpu.pipeline_mode<synchronous>, transform_indices = @transform_9, window_bounds = array<i64: 1, 32>}, {pipeline_mode = #tpu.pipeline_mode<synchronous>, transform_indices = @transform_10, window_bounds = array<i64: 1, 32>}, {pipeline_mode = #tpu.pipeline_mode<synchronous>, transform_indices = @transform_11, window_bounds = array<i64: 1, 32>}, {pipeline_mode = #tpu.pipeline_mode<synchronous>, transform_indices = @transform_12, window_bounds = array<i64: 32, 64>}, {pipeline_mode = #tpu.pipeline_mode<synchronous>, transform_indices = @transform_13, window_bounds = array<i64: 1, 64>}, {pipeline_mode = #tpu.pipeline_mode<synchronous>, transform_indices = @transform_14, window_bounds = array<i64: 64, 32>}, {pipeline_mode = #tpu.pipeline_mode<synchronous>, transform_indices = @transform_15, window_bounds = array<i64: 1, 32>}, {pipeline_mode = #tpu.pipeline_mode<synchronous>, transform_indices = @transform_16, window_bounds = array<i64: 1, 32>}, {pipeline_mode = #tpu.pipeline_mode<synchronous>, transform_indices = @transform_17, window_bounds = array<i64: 1, 32>}, {pipeline_mode = #tpu.pipeline_mode<synchronous>, transform_indices = @transform_18, window_bounds = array<i64: 32, 4>}, {pipeline_mode = #tpu.pipeline_mode<synchronous>, transform_indices = @transform_19, window_bounds = array<i64: 1, 4>}, {transform_indices = @transform_20, window_bounds = array<i64: 1, 1, 4>}]} {
    %c0 = arith.constant 0 : index
    %c0_0 = arith.constant 0 : index
    %c0_1 = arith.constant 0 : index
    %0 = vector.load %arg1[%c0, %c0_0, %c0_1] : memref<1x16x32xf32, #tpu.memory_space<vmem>>, vector<1x16x32xf32>
    %1 = vector.shape_cast %0 : vector<1x16x32xf32> to vector<16x32xf32>
    %c0_2 = arith.constant 0 : index
    %c0_3 = arith.constant 0 : index
    %2 = vector.load %arg2[%c0_2, %c0_3] : memref<16x32xf32, #tpu.memory_space<vmem>>, vector<16x32xf32>
    %3 = arith.addf %1, %2 : vector<16x32xf32>
    %cst = arith.constant 0.000000e+00 : f32
    %4 = vector.broadcast %cst : f32 to vector<16x32xf32>
    %c0_4 = arith.constant 0 : index
    %c0_5 = arith.constant 0 : index
    %c0_6 = arith.constant 0 : index
    %5 = vector.load %arg3[%c0_4, %c0_5, %c0_6] : memref<2x32x16xf32, #tpu.memory_space<vmem>>, vector<1x32x16xf32>
    %6 = vector.shape_cast %5 : vector<1x32x16xf32> to vector<32x16xf32>
    %cst_7 = arith.constant dense<0.000000e+00> : vector<16x16xf32>
    %7 = tpu.matmul %3, %6, %cst_7 {dimension_numbers = #tpu.dot_dimension_numbers<[1], [0], [0], [1], [0, 0, 1, 1], [], []>} : vector<16x32xf32>, vector<32x16xf32>, vector<16x16xf32> -> vector<16x16xf32>
    %c0_8 = arith.constant 0 : index
    %c0_9 = arith.constant 0 : index
    %c0_10 = arith.constant 0 : index
    %8 = vector.load %arg4[%c0_8, %c0_9, %c0_10] : memref<2x1x16xf32, #tpu.memory_space<vmem>>, vector<1x1x16xf32>
    %9 = vector.shape_cast %8 : vector<1x1x16xf32> to vector<1x16xf32>
    %10 = vector.broadcast %9 : vector<1x16xf32> to vector<16x16xf32>
    %11 = arith.addf %7, %10 : vector<16x16xf32>
    %c0_11 = arith.constant 0 : index
    %c0_12 = arith.constant 0 : index
    %c0_13 = arith.constant 0 : index
    %12 = vector.load %arg5[%c0_11, %c0_12, %c0_13] : memref<2x32x16xf32, #tpu.memory_space<vmem>>, vector<1x32x16xf32>
    %13 = vector.shape_cast %12 : vector<1x32x16xf32> to vector<32x16xf32>
    %cst_14 = arith.constant dense<0.000000e+00> : vector<16x16xf32>
    %14 = tpu.matmul %3, %13, %cst_14 {dimension_numbers = #tpu.dot_dimension_numbers<[1], [0], [0], [1], [0, 0, 1, 1], [], []>} : vector<16x32xf32>, vector<32x16xf32>, vector<16x16xf32> -> vector<16x16xf32>
    %c0_15 = arith.constant 0 : index
    %c0_16 = arith.constant 0 : index
    %c0_17 = arith.constant 0 : index
    %15 = vector.load %arg6[%c0_15, %c0_16, %c0_17] : memref<2x1x16xf32, #tpu.memory_space<vmem>>, vector<1x1x16xf32>
    %16 = vector.shape_cast %15 : vector<1x1x16xf32> to vector<1x16xf32>
    %17 = vector.broadcast %16 : vector<1x16xf32> to vector<16x16xf32>
    %18 = arith.addf %14, %17 : vector<16x16xf32>
    %c0_18 = arith.constant 0 : index
    %c0_19 = arith.constant 0 : index
    %c0_20 = arith.constant 0 : index
    %19 = vector.load %arg7[%c0_18, %c0_19, %c0_20] : memref<2x32x16xf32, #tpu.memory_space<vmem>>, vector<1x32x16xf32>
    %20 = vector.shape_cast %19 : vector<1x32x16xf32> to vector<32x16xf32>
    %cst_21 = arith.constant dense<0.000000e+00> : vector<16x16xf32>
    %21 = tpu.matmul %3, %20, %cst_21 {dimension_numbers = #tpu.dot_dimension_numbers<[1], [0], [0], [1], [0, 0, 1, 1], [], []>} : vector<16x32xf32>, vector<32x16xf32>, vector<16x16xf32> -> vector<16x16xf32>
    %c0_22 = arith.constant 0 : index
    %c0_23 = arith.constant 0 : index
    %c0_24 = arith.constant 0 : index
    %22 = vector.load %arg8[%c0_22, %c0_23, %c0_24] : memref<2x1x16xf32, #tpu.memory_space<vmem>>, vector<1x1x16xf32>
    %23 = vector.shape_cast %22 : vector<1x1x16xf32> to vector<1x16xf32>
    %24 = vector.broadcast %23 : vector<1x16xf32> to vector<16x16xf32>
    %25 = arith.addf %21, %24 : vector<16x16xf32>
    %cst_25 = arith.constant dense<0.000000e+00> : vector<16x16xf32>
    %26 = tpu.matmul %11, %18, %cst_25 {dimension_numbers = #tpu.dot_dimension_numbers<[1], [1], [0], [0], [0, 0, 1, 0], [], []>} : vector<16x16xf32>, vector<16x16xf32>, vector<16x16xf32> -> vector<16x16xf32>
    %cst_26 = arith.constant 2.500000e-01 : f32
    %27 = vector.broadcast %cst_26 : f32 to vector<16x16xf32>
    %28 = arith.mulf %26, %27 : vector<16x16xf32>
    %cst_27 = arith.constant dense<0xFF800000> : vector<16xf32>
    %29 = vector.multi_reduction <maximumf>, %28, %cst_27 [1] : vector<16x16xf32> to vector<16xf32>
    %30 = vector.shape_cast %29 : vector<16xf32> to vector<16x1xf32>
    %31 = vector.broadcast %30 : vector<16x1xf32> to vector<16x16xf32>
    %32 = arith.subf %28, %31 : vector<16x16xf32>
    %33 = math.exp %32 : vector<16x16xf32>
    %cst_28 = arith.constant dense<0.000000e+00> : vector<16xf32>
    %34 = vector.multi_reduction <add>, %33, %cst_28 [1] : vector<16x16xf32> to vector<16xf32>
    %35 = vector.shape_cast %34 : vector<16xf32> to vector<16x1xf32>
    %36 = vector.broadcast %35 : vector<16x1xf32> to vector<16x16xf32>
    %37 = arith.divf %33, %36 : vector<16x16xf32>
    %cst_29 = arith.constant dense<0.000000e+00> : vector<16x16xf32>
    %38 = tpu.matmul %37, %25, %cst_29 {dimension_numbers = #tpu.dot_dimension_numbers<[1], [0], [0], [1], [0, 0, 1, 1], [], []>} : vector<16x16xf32>, vector<16x16xf32>, vector<16x16xf32> -> vector<16x16xf32>
    %c0_30 = arith.constant 0 : index
    %c0_31 = arith.constant 0 : index
    %c0_32 = arith.constant 0 : index
    %39 = vector.load %arg9[%c0_30, %c0_31, %c0_32] : memref<2x16x32xf32, #tpu.memory_space<vmem>>, vector<1x16x32xf32>
    %40 = vector.shape_cast %39 : vector<1x16x32xf32> to vector<16x32xf32>
    %cst_33 = arith.constant dense<0.000000e+00> : vector<16x32xf32>
    %41 = tpu.matmul %38, %40, %cst_33 {dimension_numbers = #tpu.dot_dimension_numbers<[1], [0], [0], [1], [0, 0, 1, 1], [], []>} : vector<16x16xf32>, vector<16x32xf32>, vector<16x32xf32> -> vector<16x32xf32>
    %42 = arith.addf %4, %41 : vector<16x32xf32>
    %c1 = arith.constant 1 : index
    %c0_34 = arith.constant 0 : index
    %c0_35 = arith.constant 0 : index
    %43 = vector.load %arg3[%c1, %c0_34, %c0_35] : memref<2x32x16xf32, #tpu.memory_space<vmem>>, vector<1x32x16xf32>
    %44 = vector.shape_cast %43 : vector<1x32x16xf32> to vector<32x16xf32>
    %cst_36 = arith.constant dense<0.000000e+00> : vector<16x16xf32>
    %45 = tpu.matmul %3, %44, %cst_36 {dimension_numbers = #tpu.dot_dimension_numbers<[1], [0], [0], [1], [0, 0, 1, 1], [], []>} : vector<16x32xf32>, vector<32x16xf32>, vector<16x16xf32> -> vector<16x16xf32>
    %c1_37 = arith.constant 1 : index
    %c0_38 = arith.constant 0 : index
    %c0_39 = arith.constant 0 : index
    %46 = vector.load %arg4[%c1_37, %c0_38, %c0_39] : memref<2x1x16xf32, #tpu.memory_space<vmem>>, vector<1x1x16xf32>
    %47 = vector.shape_cast %46 : vector<1x1x16xf32> to vector<1x16xf32>
    %48 = vector.broadcast %47 : vector<1x16xf32> to vector<16x16xf32>
    %49 = arith.addf %45, %48 : vector<16x16xf32>
    %c1_40 = arith.constant 1 : index
    %c0_41 = arith.constant 0 : index
    %c0_42 = arith.constant 0 : index
    %50 = vector.load %arg5[%c1_40, %c0_41, %c0_42] : memref<2x32x16xf32, #tpu.memory_space<vmem>>, vector<1x32x16xf32>
    %51 = vector.shape_cast %50 : vector<1x32x16xf32> to vector<32x16xf32>
    %cst_43 = arith.constant dense<0.000000e+00> : vector<16x16xf32>
    %52 = tpu.matmul %3, %51, %cst_43 {dimension_numbers = #tpu.dot_dimension_numbers<[1], [0], [0], [1], [0, 0, 1, 1], [], []>} : vector<16x32xf32>, vector<32x16xf32>, vector<16x16xf32> -> vector<16x16xf32>
    %c1_44 = arith.constant 1 : index
    %c0_45 = arith.constant 0 : index
    %c0_46 = arith.constant 0 : index
    %53 = vector.load %arg6[%c1_44, %c0_45, %c0_46] : memref<2x1x16xf32, #tpu.memory_space<vmem>>, vector<1x1x16xf32>
    %54 = vector.shape_cast %53 : vector<1x1x16xf32> to vector<1x16xf32>
    %55 = vector.broadcast %54 : vector<1x16xf32> to vector<16x16xf32>
    %56 = arith.addf %52, %55 : vector<16x16xf32>
    %c1_47 = arith.constant 1 : index
    %c0_48 = arith.constant 0 : index
    %c0_49 = arith.constant 0 : index
    %57 = vector.load %arg7[%c1_47, %c0_48, %c0_49] : memref<2x32x16xf32, #tpu.memory_space<vmem>>, vector<1x32x16xf32>
    %58 = vector.shape_cast %57 : vector<1x32x16xf32> to vector<32x16xf32>
    %cst_50 = arith.constant dense<0.000000e+00> : vector<16x16xf32>
    %59 = tpu.matmul %3, %58, %cst_50 {dimension_numbers = #tpu.dot_dimension_numbers<[1], [0], [0], [1], [0, 0, 1, 1], [], []>} : vector<16x32xf32>, vector<32x16xf32>, vector<16x16xf32> -> vector<16x16xf32>
    %c1_51 = arith.constant 1 : index
    %c0_52 = arith.constant 0 : index
    %c0_53 = arith.constant 0 : index
    %60 = vector.load %arg8[%c1_51, %c0_52, %c0_53] : memref<2x1x16xf32, #tpu.memory_space<vmem>>, vector<1x1x16xf32>
    %61 = vector.shape_cast %60 : vector<1x1x16xf32> to vector<1x16xf32>
    %62 = vector.broadcast %61 : vector<1x16xf32> to vector<16x16xf32>
    %63 = arith.addf %59, %62 : vector<16x16xf32>
    %cst_54 = arith.constant dense<0.000000e+00> : vector<16x16xf32>
    %64 = tpu.matmul %49, %56, %cst_54 {dimension_numbers = #tpu.dot_dimension_numbers<[1], [1], [0], [0], [0, 0, 1, 0], [], []>} : vector<16x16xf32>, vector<16x16xf32>, vector<16x16xf32> -> vector<16x16xf32>
    %cst_55 = arith.constant 2.500000e-01 : f32
    %65 = vector.broadcast %cst_55 : f32 to vector<16x16xf32>
    %66 = arith.mulf %64, %65 : vector<16x16xf32>
    %cst_56 = arith.constant dense<0xFF800000> : vector<16xf32>
    %67 = vector.multi_reduction <maximumf>, %66, %cst_56 [1] : vector<16x16xf32> to vector<16xf32>
    %68 = vector.shape_cast %67 : vector<16xf32> to vector<16x1xf32>
    %69 = vector.broadcast %68 : vector<16x1xf32> to vector<16x16xf32>
    %70 = arith.subf %66, %69 : vector<16x16xf32>
    %71 = math.exp %70 : vector<16x16xf32>
    %cst_57 = arith.constant dense<0.000000e+00> : vector<16xf32>
    %72 = vector.multi_reduction <add>, %71, %cst_57 [1] : vector<16x16xf32> to vector<16xf32>
    %73 = vector.shape_cast %72 : vector<16xf32> to vector<16x1xf32>
    %74 = vector.broadcast %73 : vector<16x1xf32> to vector<16x16xf32>
    %75 = arith.divf %71, %74 : vector<16x16xf32>
    %cst_58 = arith.constant dense<0.000000e+00> : vector<16x16xf32>
    %76 = tpu.matmul %75, %63, %cst_58 {dimension_numbers = #tpu.dot_dimension_numbers<[1], [0], [0], [1], [0, 0, 1, 1], [], []>} : vector<16x16xf32>, vector<16x16xf32>, vector<16x16xf32> -> vector<16x16xf32>
    %c1_59 = arith.constant 1 : index
    %c0_60 = arith.constant 0 : index
    %c0_61 = arith.constant 0 : index
    %77 = vector.load %arg9[%c1_59, %c0_60, %c0_61] : memref<2x16x32xf32, #tpu.memory_space<vmem>>, vector<1x16x32xf32>
    %78 = vector.shape_cast %77 : vector<1x16x32xf32> to vector<16x32xf32>
    %cst_62 = arith.constant dense<0.000000e+00> : vector<16x32xf32>
    %79 = tpu.matmul %76, %78, %cst_62 {dimension_numbers = #tpu.dot_dimension_numbers<[1], [0], [0], [1], [0, 0, 1, 1], [], []>} : vector<16x16xf32>, vector<16x32xf32>, vector<16x32xf32> -> vector<16x32xf32>
    %80 = arith.addf %42, %79 : vector<16x32xf32>
    %c0_63 = arith.constant 0 : index
    %c0_64 = arith.constant 0 : index
    %81 = vector.load %arg10[%c0_63, %c0_64] : memref<1x32xf32, #tpu.memory_space<vmem>>, vector<1x32xf32>
    %82 = vector.broadcast %81 : vector<1x32xf32> to vector<16x32xf32>
    %83 = arith.addf %80, %82 : vector<16x32xf32>
    %84 = arith.addf %3, %83 : vector<16x32xf32>
    %cst_65 = arith.constant dense<0.000000e+00> : vector<16xf32>
    %85 = vector.multi_reduction <add>, %84, %cst_65 [1] : vector<16x32xf32> to vector<16xf32>
    %86 = vector.shape_cast %85 : vector<16xf32> to vector<16x1xf32>
    %cst_66 = arith.constant 3.200000e+01 : f32
    %87 = vector.broadcast %cst_66 : f32 to vector<16x1xf32>
    %88 = arith.divf %86, %87 : vector<16x1xf32>
    %89 = vector.broadcast %88 : vector<16x1xf32> to vector<16x32xf32>
    %90 = arith.subf %84, %89 : vector<16x32xf32>
    %91 = arith.mulf %90, %90 : vector<16x32xf32>
    %cst_67 = arith.constant dense<0.000000e+00> : vector<16xf32>
    %92 = vector.multi_reduction <add>, %91, %cst_67 [1] : vector<16x32xf32> to vector<16xf32>
    %93 = vector.shape_cast %92 : vector<16xf32> to vector<16x1xf32>
    %cst_68 = arith.constant 3.200000e+01 : f32
    %94 = vector.broadcast %cst_68 : f32 to vector<16x1xf32>
    %95 = arith.divf %93, %94 : vector<16x1xf32>
    %96 = vector.broadcast %88 : vector<16x1xf32> to vector<16x32xf32>
    %97 = arith.subf %84, %96 : vector<16x32xf32>
    %cst_69 = arith.constant 9.99999974E-6 : f32
    %98 = vector.broadcast %cst_69 : f32 to vector<16x1xf32>
    %99 = arith.addf %95, %98 : vector<16x1xf32>
    %100 = math.rsqrt %99 : vector<16x1xf32>
    %101 = vector.broadcast %100 : vector<16x1xf32> to vector<16x32xf32>
    %102 = arith.mulf %97, %101 : vector<16x32xf32>
    %c0_70 = arith.constant 0 : index
    %c0_71 = arith.constant 0 : index
    %103 = vector.load %arg11[%c0_70, %c0_71] : memref<1x32xf32, #tpu.memory_space<vmem>>, vector<1x32xf32>
    %104 = vector.broadcast %103 : vector<1x32xf32> to vector<16x32xf32>
    %105 = arith.mulf %102, %104 : vector<16x32xf32>
    %c0_72 = arith.constant 0 : index
    %c0_73 = arith.constant 0 : index
    %106 = vector.load %arg12[%c0_72, %c0_73] : memref<1x32xf32, #tpu.memory_space<vmem>>, vector<1x32xf32>
    %107 = vector.broadcast %106 : vector<1x32xf32> to vector<16x32xf32>
    %108 = arith.addf %105, %107 : vector<16x32xf32>
    %c0_74 = arith.constant 0 : index
    %c0_75 = arith.constant 0 : index
    %109 = vector.load %arg13[%c0_74, %c0_75] : memref<32x64xf32, #tpu.memory_space<vmem>>, vector<32x64xf32>
    %cst_76 = arith.constant dense<0.000000e+00> : vector<16x64xf32>
    %110 = tpu.matmul %108, %109, %cst_76 {dimension_numbers = #tpu.dot_dimension_numbers<[1], [0], [0], [1], [0, 0, 1, 1], [], []>} : vector<16x32xf32>, vector<32x64xf32>, vector<16x64xf32> -> vector<16x64xf32>
    %c0_77 = arith.constant 0 : index
    %c0_78 = arith.constant 0 : index
    %111 = vector.load %arg14[%c0_77, %c0_78] : memref<1x64xf32, #tpu.memory_space<vmem>>, vector<1x64xf32>
    %112 = vector.broadcast %111 : vector<1x64xf32> to vector<16x64xf32>
    %113 = arith.addf %110, %112 : vector<16x64xf32>
    %cst_79 = arith.constant 0.000000e+00 : f32
    %114 = vector.broadcast %cst_79 : f32 to vector<16x64xf32>
    %115 = arith.maximumf %113, %114 : vector<16x64xf32>
    %c0_80 = arith.constant 0 : index
    %c0_81 = arith.constant 0 : index
    %116 = vector.load %arg15[%c0_80, %c0_81] : memref<64x32xf32, #tpu.memory_space<vmem>>, vector<64x32xf32>
    %cst_82 = arith.constant dense<0.000000e+00> : vector<16x32xf32>
    %117 = tpu.matmul %115, %116, %cst_82 {dimension_numbers = #tpu.dot_dimension_numbers<[1], [0], [0], [1], [0, 0, 1, 1], [], []>} : vector<16x64xf32>, vector<64x32xf32>, vector<16x32xf32> -> vector<16x32xf32>
    %c0_83 = arith.constant 0 : index
    %c0_84 = arith.constant 0 : index
    %118 = vector.load %arg16[%c0_83, %c0_84] : memref<1x32xf32, #tpu.memory_space<vmem>>, vector<1x32xf32>
    %119 = vector.broadcast %118 : vector<1x32xf32> to vector<16x32xf32>
    %120 = arith.addf %117, %119 : vector<16x32xf32>
    %121 = arith.addf %108, %120 : vector<16x32xf32>
    %cst_85 = arith.constant dense<0.000000e+00> : vector<16xf32>
    %122 = vector.multi_reduction <add>, %121, %cst_85 [1] : vector<16x32xf32> to vector<16xf32>
    %123 = vector.shape_cast %122 : vector<16xf32> to vector<16x1xf32>
    %cst_86 = arith.constant 3.200000e+01 : f32
    %124 = vector.broadcast %cst_86 : f32 to vector<16x1xf32>
    %125 = arith.divf %123, %124 : vector<16x1xf32>
    %126 = vector.broadcast %125 : vector<16x1xf32> to vector<16x32xf32>
    %127 = arith.subf %121, %126 : vector<16x32xf32>
    %128 = arith.mulf %127, %127 : vector<16x32xf32>
    %cst_87 = arith.constant dense<0.000000e+00> : vector<16xf32>
    %129 = vector.multi_reduction <add>, %128, %cst_87 [1] : vector<16x32xf32> to vector<16xf32>
    %130 = vector.shape_cast %129 : vector<16xf32> to vector<16x1xf32>
    %cst_88 = arith.constant 3.200000e+01 : f32
    %131 = vector.broadcast %cst_88 : f32 to vector<16x1xf32>
    %132 = arith.divf %130, %131 : vector<16x1xf32>
    %133 = vector.broadcast %125 : vector<16x1xf32> to vector<16x32xf32>
    %134 = arith.subf %121, %133 : vector<16x32xf32>
    %cst_89 = arith.constant 9.99999974E-6 : f32
    %135 = vector.broadcast %cst_89 : f32 to vector<16x1xf32>
    %136 = arith.addf %132, %135 : vector<16x1xf32>
    %137 = math.rsqrt %136 : vector<16x1xf32>
    %138 = vector.broadcast %137 : vector<16x1xf32> to vector<16x32xf32>
    %139 = arith.mulf %134, %138 : vector<16x32xf32>
    %c0_90 = arith.constant 0 : index
    %c0_91 = arith.constant 0 : index
    %140 = vector.load %arg17[%c0_90, %c0_91] : memref<1x32xf32, #tpu.memory_space<vmem>>, vector<1x32xf32>
    %141 = vector.broadcast %140 : vector<1x32xf32> to vector<16x32xf32>
    %142 = arith.mulf %139, %141 : vector<16x32xf32>
    %c0_92 = arith.constant 0 : index
    %c0_93 = arith.constant 0 : index
    %143 = vector.load %arg18[%c0_92, %c0_93] : memref<1x32xf32, #tpu.memory_space<vmem>>, vector<1x32xf32>
    %144 = vector.broadcast %143 : vector<1x32xf32> to vector<16x32xf32>
    %145 = arith.addf %142, %144 : vector<16x32xf32>
    %cst_94 = arith.constant dense<0.000000e+00> : vector<32xf32>
    %146 = vector.multi_reduction <add>, %145, %cst_94 [0] : vector<16x32xf32> to vector<32xf32>
    %147 = vector.shape_cast %146 : vector<32xf32> to vector<1x32xf32>
    %cst_95 = arith.constant 1.600000e+01 : f32
    %148 = vector.broadcast %cst_95 : f32 to vector<1x32xf32>
    %149 = arith.divf %147, %148 : vector<1x32xf32>
    %c0_96 = arith.constant 0 : index
    %c0_97 = arith.constant 0 : index
    %150 = vector.load %arg19[%c0_96, %c0_97] : memref<32x4xf32, #tpu.memory_space<vmem>>, vector<32x4xf32>
    %cst_98 = arith.constant dense<0.000000e+00> : vector<1x4xf32>
    %151 = tpu.matmul %149, %150, %cst_98 {dimension_numbers = #tpu.dot_dimension_numbers<[1], [0], [0], [1], [0, 0, 1, 1], [], []>} : vector<1x32xf32>, vector<32x4xf32>, vector<1x4xf32> -> vector<1x4xf32>
    %c0_99 = arith.constant 0 : index
    %c0_100 = arith.constant 0 : index
    %152 = vector.load %arg20[%c0_99, %c0_100] : memref<1x4xf32, #tpu.memory_space<vmem>>, vector<1x4xf32>
    %153 = arith.addf %151, %152 : vector<1x4xf32>
    %154 = arith.negf %153 : vector<1x4xf32>
    %155 = math.exp %154 : vector<1x4xf32>
    %cst_101 = arith.constant 1.000000e+00 : f32
    %156 = vector.broadcast %cst_101 : f32 to vector<1x4xf32>
    %157 = arith.addf %156, %155 : vector<1x4xf32>
    %158 = arith.divf %156, %157 : vector<1x4xf32>
    %c0_102 = arith.constant 0 : index
    %c0_103 = arith.constant 0 : index
    %c0_104 = arith.constant 0 : index
    %159 = vector.load %arg21[%c0_102, %c0_103, %c0_104] : memref<1x1x4xf32, #tpu.memory_space<vmem>>, vector<1x1x4xf32>
    %160 = vector.shape_cast %159 : vector<1x1x4xf32> to vector<1x4xf32>
    %161 = vector.shape_cast %158 : vector<1x4xf32> to vector<1x1x4xf32>
    tpu.vector_store %arg21[%c0_102, %c0_103, %c0_104], %161 {strides = array<i32>} : memref<1x1x4xf32, #tpu.memory_space<vmem>>, vector<1x1x4xf32>,
    return
  }
  func.func @transform_0(%arg0: i32) -> (i32, i32, i32) {
    %c0_i32 = arith.constant 0 : i32
    %c0_i32_0 = arith.constant 0 : i32
    %c0_i32_1 = arith.constant 0 : i32
    return %arg0, %c0_i32, %c0_i32_0 : i32, i32, i32
  }
  func.func @transform_1(%arg0: i32) -> (i32, i32) {
    %c0_i32 = arith.constant 0 : i32
    %c0_i32_0 = arith.constant 0 : i32
    %c0_i32_1 = arith.constant 0 : i32
    return %c0_i32, %c0_i32_0 : i32, i32
  }
  func.func @transform_2(%arg0: i32) -> (i32, i32, i32) {
    %c0_i32 = arith.constant 0 : i32
    %c0_i32_0 = arith.constant 0 : i32
    %c0_i32_1 = arith.constant 0 : i32
    %c0_i32_2 = arith.constant 0 : i32
    return %c0_i32, %c0_i32_0, %c0_i32_1 : i32, i32, i32
  }
  func.func @transform_3(%arg0: i32) -> (i32, i32, i32) {
    %c0_i32 = arith.constant 0 : i32
    %c0_i32_0 = arith.constant 0 : i32
    %c0_i32_1 = arith.constant 0 : i32
    %c0_i32_2 = arith.constant 0 : i32
    return %c0_i32, %c0_i32_0, %c0_i32_1 : i32, i32, i32
  }
  func.func @transform_4(%arg0: i32) -> (i32, i32, i32) {
    %c0_i32 = arith.constant 0 : i32
    %c0_i32_0 = arith.constant 0 : i32
    %c0_i32_1 = arith.constant 0 : i32
    %c0_i32_2 = arith.constant 0 : i32
    return %c0_i32, %c0_i32_0, %c0_i32_1 : i32, i32, i32
  }
  func.func @transform_5(%arg0: i32) -> (i32, i32, i32) {
    %c0_i32 = arith.constant 0 : i32
    %c0_i32_0 = arith.constant 0 : i32
    %c0_i32_1 = arith.constant 0 : i32
    %c0_i32_2 = arith.constant 0 : i32
    return %c0_i32, %c0_i32_0, %c0_i32_1 : i32, i32, i32
  }
  func.func @transform_6(%arg0: i32) -> (i32, i32, i32) {
    %c0_i32 = arith.constant 0 : i32
    %c0_i32_0 = arith.constant 0 : i32
    %c0_i32_1 = arith.constant 0 : i32
    %c0_i32_2 = arith.constant 0 : i32
    return %c0_i32, %c0_i32_0, %c0_i32_1 : i32, i32, i32
  }
  func.func @transform_7(%arg0: i32) -> (i32, i32, i32) {
    %c0_i32 = arith.constant 0 : i32
    %c0_i32_0 = arith.constant 0 : i32
    %c0_i32_1 = arith.constant 0 : i32
    %c0_i32_2 = arith.constant 0 : i32
    return %c0_i32, %c0_i32_0, %c0_i32_1 : i32, i32, i32
  }
  func.func @transform_8(%arg0: i32) -> (i32, i32, i32) {
    %c0_i32 = arith.constant 0 : i32
    %c0_i32_0 = arith.constant 0 : i32
    %c0_i32_1 = arith.constant 0 : i32
    %c0_i32_2 = arith.constant 0 : i32
    return %c0_i32, %c0_i32_0, %c0_i32_1 : i32, i32, i32
  }
  func.func @transform_9(%arg0: i32) -> (i32, i32) {
    %c0_i32 = arith.constant 0 : i32
    %c0_i32_0 = arith.constant 0 : i32
    %c0_i32_1 = arith.constant 0 : i32
    return %c0_i32, %c0_i32_0 : i32, i32
  }
  func.func @transform_10(%arg0: i32) -> (i32, i32) {
    %c0_i32 = arith.constant 0 : i32
    %c0_i32_0 = arith.constant 0 : i32
    %c0_i32_1 = arith.constant 0 : i32
    return %c0_i32, %c0_i32_0 : i32, i32
  }
  func.func @transform_11(%arg0: i32) -> (i32, i32) {
    %c0_i32 = arith.constant 0 : i32
    %c0_i32_0 = arith.constant 0 : i32
    %c0_i32_1 = arith.constant 0 : i32
    return %c0_i32, %c0_i32_0 : i32, i32
  }
  func.func @transform_12(%arg0: i32) -> (i32, i32) {
    %c0_i32 = arith.constant 0 : i32
    %c0_i32_0 = arith.constant 0 : i32
    %c0_i32_1 = arith.constant 0 : i32
    return %c0_i32, %c0_i32_0 : i32, i32
  }
  func.func @transform_13(%arg0: i32) -> (i32, i32) {
    %c0_i32 = arith.constant 0 : i32
    %c0_i32_0 = arith.constant 0 : i32
    %c0_i32_1 = arith.constant 0 : i32
    return %c0_i32, %c0_i32_0 : i32, i32
  }
  func.func @transform_14(%arg0: i32) -> (i32, i32) {
    %c0_i32 = arith.constant 0 : i32
    %c0_i32_0 = arith.constant 0 : i32
    %c0_i32_1 = arith.constant 0 : i32
    return %c0_i32, %c0_i32_0 : i32, i32
  }
  func.func @transform_15(%arg0: i32) -> (i32, i32) {
    %c0_i32 = arith.constant 0 : i32
    %c0_i32_0 = arith.constant 0 : i32
    %c0_i32_1 = arith.constant 0 : i32
    return %c0_i32, %c0_i32_0 : i32, i32
  }
  func.func @transform_16(%arg0: i32) -> (i32, i32) {
    %c0_i32 = arith.constant 0 : i32
    %c0_i32_0 = arith.constant 0 : i32
    %c0_i32_1 = arith.constant 0 : i32
    return %c0_i32, %c0_i32_0 : i32, i32
  }
  func.func @transform_17(%arg0: i32) -> (i32, i32) {
    %c0_i32 = arith.constant 0 : i32
    %c0_i32_0 = arith.constant 0 : i32
    %c0_i32_1 = arith.constant 0 : i32
    return %c0_i32, %c0_i32_0 : i32, i32
  }
  func.func @transform_18(%arg0: i32) -> (i32, i32) {
    %c0_i32 = arith.constant 0 : i32
    %c0_i32_0 = arith.constant 0 : i32
    %c0_i32_1 = arith.constant 0 : i32
    return %c0_i32, %c0_i32_0 : i32, i32
  }
  func.func @transform_19(%arg0: i32) -> (i32, i32) {
    %c0_i32 = arith.constant 0 : i32
    %c0_i32_0 = arith.constant 0 : i32
    %c0_i32_1 = arith.constant 0 : i32
    return %c0_i32, %c0_i32_0 : i32, i32
  }
  func.func @transform_20(%arg0: i32) -> (i32, i32, i32) {
    %c0_i32 = arith.constant 0 : i32
    %c0_i32_0 = arith.constant 0 : i32
    %c0_i32_1 = arith.constant 0 : i32
    return %arg0, %c0_i32, %c0_i32_0 : i32, i32, i32
  }
}

</mosaic_0001>

<llo_original>
// kernel: tpu_custom_call.1
$region0: #{tpu_custom_call.1}
  #allocation0 [shape = 'u32[]', space=smem, size = 0x4, offset = 0x4, fixed_abs, tag = 'smem constant byte address 0x4 - core index']
  #allocation1 [shape = 'u32[144,128]{1,0:T(1,128)}', space=vmem, size = 0x12000, scoped, tag = 'internal scratch']
  %s0 = inlined_call_operand.vmem [shape: f32[4,16,32], index: 0, kind: input, shape index: {}]
  %s1 = inlined_call_operand.vmem [shape: f32[16,32], index: 1, kind: input, shape index: {}]
  %s2 = inlined_call_operand.vmem [shape: f32[2,32,16], index: 2, kind: input, shape index: {}]
  %s3 = inlined_call_operand.vmem [shape: f32[2,1,16], index: 3, kind: input, shape index: {}]
  %s4 = inlined_call_operand.vmem [shape: f32[2,32,16], index: 4, kind: input, shape index: {}]
  %s5 = inlined_call_operand.vmem [shape: f32[2,1,16], index: 5, kind: input, shape index: {}]
  %s6 = inlined_call_operand.vmem [shape: f32[2,32,16], index: 6, kind: input, shape index: {}]
  %s7 = inlined_call_operand.vmem [shape: f32[2,1,16], index: 7, kind: input, shape index: {}]
  %s8 = inlined_call_operand.vmem [shape: f32[2,16,32], index: 8, kind: input, shape index: {}]
  %s9 = inlined_call_operand.vmem [shape: f32[1,32], index: 9, kind: input, shape index: {}]
  %s10 = inlined_call_operand.vmem [shape: f32[1,32], index: 10, kind: input, shape index: {}]
  %s11 = inlined_call_operand.vmem [shape: f32[1,32], index: 11, kind: input, shape index: {}]
  %s12 = inlined_call_operand.vmem [shape: f32[32,64], index: 12, kind: input, shape index: {}]
  %s13 = inlined_call_operand.vmem [shape: f32[1,64], index: 13, kind: input, shape index: {}]
  %s14 = inlined_call_operand.vmem [shape: f32[64,32], index: 14, kind: input, shape index: {}]
  %s15 = inlined_call_operand.vmem [shape: f32[1,32], index: 15, kind: input, shape index: {}]
  %s16 = inlined_call_operand.vmem [shape: f32[1,32], index: 16, kind: input, shape index: {}]
  %s17 = inlined_call_operand.vmem [shape: f32[1,32], index: 17, kind: input, shape index: {}]
  %s18 = inlined_call_operand.vmem [shape: f32[32,4], index: 18, kind: input, shape index: {}]
  %s19 = inlined_call_operand.vmem [shape: f32[1,4], index: 19, kind: input, shape index: {}]
  %s20 = inlined_call_operand.hbm [shape: f32[4,1,4], index: 20, kind: output, shape index: {}]
  %s21 = sld [smem:[#allocation0]]
  $region113: #{tpu_custom_call.1} parent=0
    _
  %s23 = ssub.s32 1, %s21
  %s24 = scalar_select 0, %s23, %s21
  $region1: #{tpu_custom_call.1} parent=0
    #allocation2 [shape = 'u8[1024]{0}', space=vmem, size = 0x400, scoped, tag = 'output window, operand 0']
    #allocation3 [shape = 's32[2]{0}', space=sflag, size = 0x8, scoped, tag = 'scoped memory for tpu_custom_call.1']
    %25 = vsyncpa [#allocation3], 0
    %s26 = scalar_lea.sflag [#allocation3], 1
    %27 = vsyncpa %s26, 0
    loop: start=0, step=1, limit=6
    $region2: #{tpu_custom_call.1} parent=1 // loop_pre_header
      _
    $region3: #{tpu_custom_call.1} parent=1 // loop_header
      %s29 = sphi 0, %s33
      %p30 = scmp.ge.s32.totalorder %s29, 6
      %s39 = sphi 0, %s41
      %s42 = sphi 0, %s39
      %s43 = sphi 0, %s42
      %s59 = sphi 0, %s43
      %s63 = sphi 0, %s63
      %s65 = sphi 0, %s63
      %s66 = sphi 0, %s65
      %s80 = sphi 0, %s66
      %s84 = sphi 0, %s84
      %s86 = sphi 0, %s84
      %s87 = sphi 0, %s86
      %s101 = sphi 0, %s87
      %s105 = sphi 0, %s105
      %s107 = sphi 0, %s105
      %s108 = sphi 0, %s107
      %s122 = sphi 0, %s108
      %s126 = sphi 0, %s126
      %s128 = sphi 0, %s126
      %s129 = sphi 0, %s128
      %s143 = sphi 0, %s129
      %s147 = sphi 0, %s147
      %s149 = sphi 0, %s147
      %s150 = sphi 0, %s149
      %s164 = sphi 0, %s150
      %s168 = sphi 0, %s168
      %s170 = sphi 0, %s168
      %s171 = sphi 0, %s170
      %s185 = sphi 0, %s171
      %s189 = sphi 0, %s189
      %s191 = sphi 0, %s189
      %s192 = sphi 0, %s191
      %s206 = sphi 0, %s192
      %s210 = sphi 0, %s210
      %s212 = sphi 0, %s210
      %s213 = sphi 0, %s212
      %s227 = sphi 0, %s213
      %s231 = sphi 0, %s231
      %s233 = sphi 0, %s231
      %s234 = sphi 0, %s233
      %s248 = sphi 0, %s234
      %s252 = sphi 0, %s252
      %s254 = sphi 0, %s252
      %s255 = sphi 0, %s254
      %s269 = sphi 0, %s255
      %s273 = sphi 0, %s273
      %s275 = sphi 0, %s273
      %s276 = sphi 0, %s275
      %s290 = sphi 0, %s276
      %s294 = sphi 0, %s294
      %s296 = sphi 0, %s294
      %s297 = sphi 0, %s296
      %s311 = sphi 0, %s297
      %s315 = sphi 0, %s315
      %s317 = sphi 0, %s315
      %s318 = sphi 0, %s317
      %s332 = sphi 0, %s318
      %s336 = sphi 0, %s336
      %s338 = sphi 0, %s336
      %s339 = sphi 0, %s338
      %s353 = sphi 0, %s339
      %s357 = sphi 0, %s357
      %s359 = sphi 0, %s357
      %s360 = sphi 0, %s359
      %s374 = sphi 0, %s360
      %s378 = sphi 0, %s378
      %s380 = sphi 0, %s378
      %s381 = sphi 0, %s380
      %s395 = sphi 0, %s381
      %s399 = sphi 0, %s399
      %s401 = sphi 0, %s399
      %s402 = sphi 0, %s401
      %s416 = sphi 0, %s402
      %s420 = sphi 0, %s420
      %s422 = sphi 0, %s420
      %s423 = sphi 0, %s422
      %s437 = sphi 0, %s423
      %s441 = sphi 0, %s441
      %s443 = sphi 0, %s441
      %s444 = sphi 0, %s443
      %s458 = sphi 0, %s444
      %s464 = sphi 0, %s466
      %s467 = sphi 0, %s464
      %s468 = sphi 0, %s467
      %s484 = sphi 0, %s468
    $region4: #{tpu_custom_call.1} parent=1 // loop_header_branch
      %32 = sbr.rel (%p30) target = $region8
    $region5: #{tpu_custom_call.1} parent=1 // loop_body
      %s34 = ssub.s32 %s29, 1
      %s35 = ssub.s32 %s29, 2
      %s36 = sadd.s32 %s29, 1
      %s37 = ssub.s32 %s29, %s36
      %p38 = scmp.eq.s32.totalorder %s37, 0
      %s40 = sadd.s32 %s39, 1
      %s41 = scalar_select %p38, %s39, %s40
      %p44 = pneg %p38
      %p45 = scmp.eq.s32.totalorder %s29, 3
      %p46 = por %p44, %p45
      %p47 = scmp.ne.s32.totalorder %s39, %s42
      %p48 = scmp.eq.s32.totalorder %s29, 0
      %p49 = por %p47, %p48
      %p50 = scmp.ne.s32.totalorder %s39, %s42
      %p51 = scmp.eq.s32.totalorder %s34, 3
      %p52 = por %p50, %p51
      %p53 = scmp.ne.s32.totalorder %s42, %s43
      %p54 = scmp.eq.s32.totalorder %s34, 0
      %p55 = por %p53, %p54
      %p56 = scmp.ne.s32.totalorder %s42, %s43
      %p57 = scmp.eq.s32.totalorder %s35, 3
      %p58 = por %p56, %p57
      %p60 = scmp.ne.s32.totalorder %s43, %s59
      %p61 = scmp.eq.s32.totalorder %s35, 0
      %p62 = por %p60, %p61
      %s64 = sadd.s32 %s63, 1
      %p67 = scmp.eq.s32.totalorder %s29, 3
      %p68 = scmp.ne.s32.totalorder %s63, %s65
      %p69 = scmp.eq.s32.totalorder %s29, 0
      %p70 = por %p68, %p69
      %p71 = scmp.ne.s32.totalorder %s63, %s65
      %p72 = scmp.eq.s32.totalorder %s34, 3
      %p73 = por %p71, %p72
      %p74 = scmp.ne.s32.totalorder %s65, %s66
      %p75 = scmp.eq.s32.totalorder %s34, 0
      %p76 = por %p74, %p75
      %p77 = scmp.ne.s32.totalorder %s65, %s66
      %p78 = scmp.eq.s32.totalorder %s35, 3
      %p79 = por %p77, %p78
      %p81 = scmp.ne.s32.totalorder %s66, %s80
      %p82 = scmp.eq.s32.totalorder %s35, 0
      %p83 = por %p81, %p82
      %s85 = sadd.s32 %s84, 1
      %p88 = scmp.eq.s32.totalorder %s29, 3
      %p89 = scmp.ne.s32.totalorder %s84, %s86
      %p90 = scmp.eq.s32.totalorder %s29, 0
      %p91 = por %p89, %p90
      %p92 = scmp.ne.s32.totalorder %s84, %s86
      %p93 = scmp.eq.s32.totalorder %s34, 3
      %p94 = por %p92, %p93
      %p95 = scmp.ne.s32.totalorder %s86, %s87
      %p96 = scmp.eq.s32.totalorder %s34, 0
      %p97 = por %p95, %p96
      %p98 = scmp.ne.s32.totalorder %s86, %s87
      %p99 = scmp.eq.s32.totalorder %s35, 3
      %p100 = por %p98, %p99
      %p102 = scmp.ne.s32.totalorder %s87, %s101
      %p103 = scmp.eq.s32.totalorder %s35, 0
      %p104 = por %p102, %p103
      %s106 = sadd.s32 %s105, 1
      %p109 = scmp.eq.s32.totalorder %s29, 3
      %p110 = scmp.ne.s32.totalorder %s105, %s107
      %p111 = scmp.eq.s32.totalorder %s29, 0
      %p112 = por %p110, %p111
      %p113 = scmp.ne.s32.totalorder %s105, %s107
      %p114 = scmp.eq.s32.totalorder %s34, 3
      %p115 = por %p113, %p114
      %p116 = scmp.ne.s32.totalorder %s107, %s108
      %p117 = scmp.eq.s32.totalorder %s34, 0
      %p118 = por %p116, %p117
      %p119 = scmp.ne.s32.totalorder %s107, %s108
      %p120 = scmp.eq.s32.totalorder %s35, 3
      %p121 = por %p119, %p120
      %p123 = scmp.ne.s32.totalorder %s108, %s122
      %p124 = scmp.eq.s32.totalorder %s35, 0
      %p125 = por %p123, %p124
      %s127 = sadd.s32 %s126, 1
      %p130 = scmp.eq.s32.totalorder %s29, 3
      %p131 = scmp.ne.s32.totalorder %s126, %s128
      %p132 = scmp.eq.s32.totalorder %s29, 0
      %p133 = por %p131, %p132
      %p134 = scmp.ne.s32.totalorder %s126, %s128
      %p135 = scmp.eq.s32.totalorder %s34, 3
      %p136 = por %p134, %p135
      %p137 = scmp.ne.s32.totalorder %s128, %s129
      %p138 = scmp.eq.s32.totalorder %s34, 0
      %p139 = por %p137, %p138
      %p140 = scmp.ne.s32.totalorder %s128, %s129
      %p141 = scmp.eq.s32.totalorder %s35, 3
      %p142 = por %p140, %p141
      %p144 = scmp.ne.s32.totalorder %s129, %s143
      %p145 = scmp.eq.s32.totalorder %s35, 0
      %p146 = por %p144, %p145
      %s148 = sadd.s32 %s147, 1
      %p151 = scmp.eq.s32.totalorder %s29, 3
      %p152 = scmp.ne.s32.totalorder %s147, %s149
      %p153 = scmp.eq.s32.totalorder %s29, 0
      %p154 = por %p152, %p153
      %p155 = scmp.ne.s32.totalorder %s147, %s149
      %p156 = scmp.eq.s32.totalorder %s34, 3
      %p157 = por %p155, %p156
      %p158 = scmp.ne.s32.totalorder %s149, %s150
      %p159 = scmp.eq.s32.totalorder %s34, 0
      %p160 = por %p158, %p159
      %p161 = scmp.ne.s32.totalorder %s149, %s150
      %p162 = scmp.eq.s32.totalorder %s35, 3
      %p163 = por %p161, %p162
      %p165 = scmp.ne.s32.totalorder %s150, %s164
      %p166 = scmp.eq.s32.totalorder %s35, 0
      %p167 = por %p165, %p166
      %s169 = sadd.s32 %s168, 1
      %p172 = scmp.eq.s32.totalorder %s29, 3
      %p173 = scmp.ne.s32.totalorder %s168, %s170
      %p174 = scmp.eq.s32.totalorder %s29, 0
      %p175 = por %p173, %p174
      %p176 = scmp.ne.s32.totalorder %s168, %s170
      %p177 = scmp.eq.s32.totalorder %s34, 3
      %p178 = por %p176, %p177
      %p179 = scmp.ne.s32.totalorder %s170, %s171
      %p180 = scmp.eq.s32.totalorder %s34, 0
      %p181 = por %p179, %p180
      %p182 = scmp.ne.s32.totalorder %s170, %s171
      %p183 = scmp.eq.s32.totalorder %s35, 3
      %p184 = por %p182, %p183
      %p186 = scmp.ne.s32.totalorder %s171, %s185
      %p187 = scmp.eq.s32.totalorder %s35, 0
      %p188 = por %p186, %p187
      %s190 = sadd.s32 %s189, 1
      %p193 = scmp.eq.s32.totalorder %s29, 3
      %p194 = scmp.ne.s32.totalorder %s189, %s191
      %p195 = scmp.eq.s32.totalorder %s29, 0
      %p196 = por %p194, %p195
      %p197 = scmp.ne.s32.totalorder %s189, %s191
      %p198 = scmp.eq.s32.totalorder %s34, 3
      %p199 = por %p197, %p198
      %p200 = scmp.ne.s32.totalorder %s191, %s192
      %p201 = scmp.eq.s32.totalorder %s34, 0
      %p202 = por %p200, %p201
      %p203 = scmp.ne.s32.totalorder %s191, %s192
      %p204 = scmp.eq.s32.totalorder %s35, 3
      %p205 = por %p203, %p204
      %p207 = scmp.ne.s32.totalorder %s192, %s206
      %p208 = scmp.eq.s32.totalorder %s35, 0
      %p209 = por %p207, %p208
      %s211 = sadd.s32 %s210, 1
      %p214 = scmp.eq.s32.totalorder %s29, 3
      %p215 = scmp.ne.s32.totalorder %s210, %s212
      %p216 = scmp.eq.s32.totalorder %s29, 0
      %p217 = por %p215, %p216
      %p218 = scmp.ne.s32.totalorder %s210, %s212
      %p219 = scmp.eq.s32.totalorder %s34, 3
      %p220 = por %p218, %p219
      %p221 = scmp.ne.s32.totalorder %s212, %s213
      %p222 = scmp.eq.s32.totalorder %s34, 0
      %p223 = por %p221, %p222
      %p224 = scmp.ne.s32.totalorder %s212, %s213
      %p225 = scmp.eq.s32.totalorder %s35, 3
      %p226 = por %p224, %p225
      %p228 = scmp.ne.s32.totalorder %s213, %s227
      %p229 = scmp.eq.s32.totalorder %s35, 0
      %p230 = por %p228, %p229
      %s232 = sadd.s32 %s231, 1
      %p235 = scmp.eq.s32.totalorder %s29, 3
      %p236 = scmp.ne.s32.totalorder %s231, %s233
      %p237 = scmp.eq.s32.totalorder %s29, 0
      %p238 = por %p236, %p237
      %p239 = scmp.ne.s32.totalorder %s231, %s233
      %p240 = scmp.eq.s32.totalorder %s34, 3
      %p241 = por %p239, %p240
      %p242 = scmp.ne.s32.totalorder %s233, %s234
      %p243 = scmp.eq.s32.totalorder %s34, 0
      %p244 = por %p242, %p243
      %p245 = scmp.ne.s32.totalorder %s233, %s234
      %p246 = scmp.eq.s32.totalorder %s35, 3
      %p247 = por %p245, %p246
      %p249 = scmp.ne.s32.totalorder %s234, %s248
      %p250 = scmp.eq.s32.totalorder %s35, 0
      %p251 = por %p249, %p250
      %s253 = sadd.s32 %s252, 1
      %p256 = scmp.eq.s32.totalorder %s29, 3
      %p257 = scmp.ne.s32.totalorder %s252, %s254
      %p258 = scmp.eq.s32.totalorder %s29, 0
      %p259 = por %p257, %p258
      %p260 = scmp.ne.s32.totalorder %s252, %s254
      %p261 = scmp.eq.s32.totalorder %s34, 3
      %p262 = por %p260, %p261
      %p263 = scmp.ne.s32.totalorder %s254, %s255
      %p264 = scmp.eq.s32.totalorder %s34, 0
      %p265 = por %p263, %p264
      %p266 = scmp.ne.s32.totalorder %s254, %s255
      %p267 = scmp.eq.s32.totalorder %s35, 3
      %p268 = por %p266, %p267
      %p270 = scmp.ne.s32.totalorder %s255, %s269
      %p271 = scmp.eq.s32.totalorder %s35, 0
      %p272 = por %p270, %p271
      %s274 = sadd.s32 %s273, 1
      %p277 = scmp.eq.s32.totalorder %s29, 3
      %p278 = scmp.ne.s32.totalorder %s273, %s275
      %p279 = scmp.eq.s32.totalorder %s29, 0
      %p280 = por %p278, %p279
      %p281 = scmp.ne.s32.totalorder %s273, %s275
      %p282 = scmp.eq.s32.totalorder %s34, 3
      %p283 = por %p281, %p282
      %p284 = scmp.ne.s32.totalorder %s275, %s276
      %p285 = scmp.eq.s32.totalorder %s34, 0
      %p286 = por %p284, %p285
      %p287 = scmp.ne.s32.totalorder %s275, %s276
      %p288 = scmp.eq.s32.totalorder %s35, 3
      %p289 = por %p287, %p288
      %p291 = scmp.ne.s32.totalorder %s276, %s290
      %p292 = scmp.eq.s32.totalorder %s35, 0
      %p293 = por %p291, %p292
      %s295 = sadd.s32 %s294, 1
      %p298 = scmp.eq.s32.totalorder %s29, 3
      %p299 = scmp.ne.s32.totalorder %s294, %s296
      %p300 = scmp.eq.s32.totalorder %s29, 0
      %p301 = por %p299, %p300
      %p302 = scmp.ne.s32.totalorder %s294, %s296
      %p303 = scmp.eq.s32.totalorder %s34, 3
      %p304 = por %p302, %p303
      %p305 = scmp.ne.s32.totalorder %s296, %s297
      %p306 = scmp.eq.s32.totalorder %s34, 0
      %p307 = por %p305, %p306
      %p308 = scmp.ne.s32.totalorder %s296, %s297
      %p309 = scmp.eq.s32.totalorder %s35, 3
      %p310 = por %p308, %p309
      %p312 = scmp.ne.s32.totalorder %s297, %s311
      %p313 = scmp.eq.s32.totalorder %s35, 0
      %p314 = por %p312, %p313
      %s316 = sadd.s32 %s315, 1
      %p319 = scmp.eq.s32.totalorder %s29, 3
      %p320 = scmp.ne.s32.totalorder %s315, %s317
      %p321 = scmp.eq.s32.totalorder %s29, 0
      %p322 = por %p320, %p321
      %p323 = scmp.ne.s32.totalorder %s315, %s317
      %p324 = scmp.eq.s32.totalorder %s34, 3
      %p325 = por %p323, %p324
      %p326 = scmp.ne.s32.totalorder %s317, %s318
      %p327 = scmp.eq.s32.totalorder %s34, 0
      %p328 = por %p326, %p327
      %p329 = scmp.ne.s32.totalorder %s317, %s318
      %p330 = scmp.eq.s32.totalorder %s35, 3
      %p331 = por %p329, %p330
      %p333 = scmp.ne.s32.totalorder %s318, %s332
      %p334 = scmp.eq.s32.totalorder %s35, 0
      %p335 = por %p333, %p334
      %s337 = sadd.s32 %s336, 1
      %p340 = scmp.eq.s32.totalorder %s29, 3
      %p341 = scmp.ne.s32.totalorder %s336, %s338
      %p342 = scmp.eq.s32.totalorder %s29, 0
      %p343 = por %p341, %p342
      %p344 = scmp.ne.s32.totalorder %s336, %s338
      %p345 = scmp.eq.s32.totalorder %s34, 3
      %p346 = por %p344, %p345
      %p347 = scmp.ne.s32.totalorder %s338, %s339
      %p348 = scmp.eq.s32.totalorder %s34, 0
      %p349 = por %p347, %p348
      %p350 = scmp.ne.s32.totalorder %s338, %s339
      %p351 = scmp.eq.s32.totalorder %s35, 3
      %p352 = por %p350, %p351
      %p354 = scmp.ne.s32.totalorder %s339, %s353
      %p355 = scmp.eq.s32.totalorder %s35, 0
      %p356 = por %p354, %p355
      %s358 = sadd.s32 %s357, 1
      %p361 = scmp.eq.s32.totalorder %s29, 3
      %p362 = scmp.ne.s32.totalorder %s357, %s359
      %p363 = scmp.eq.s32.totalorder %s29, 0
      %p364 = por %p362, %p363
      %p365 = scmp.ne.s32.totalorder %s357, %s359
      %p366 = scmp.eq.s32.totalorder %s34, 3
      %p367 = por %p365, %p366
      %p368 = scmp.ne.s32.totalorder %s359, %s360
      %p369 = scmp.eq.s32.totalorder %s34, 0
      %p370 = por %p368, %p369
      %p371 = scmp.ne.s32.totalorder %s359, %s360
      %p372 = scmp.eq.s32.totalorder %s35, 3
      %p373 = por %p371, %p372
      %p375 = scmp.ne.s32.totalorder %s360, %s374
      %p376 = scmp.eq.s32.totalorder %s35, 0
      %p377 = por %p375, %p376
      %s379 = sadd.s32 %s378, 1
      %p382 = scmp.eq.s32.totalorder %s29, 3
      %p383 = scmp.ne.s32.totalorder %s378, %s380
      %p384 = scmp.eq.s32.totalorder %s29, 0
      %p385 = por %p383, %p384
      %p386 = scmp.ne.s32.totalorder %s378, %s380
      %p387 = scmp.eq.s32.totalorder %s34, 3
      %p388 = por %p386, %p387
      %p389 = scmp.ne.s32.totalorder %s380, %s381
      %p390 = scmp.eq.s32.totalorder %s34, 0
      %p391 = por %p389, %p390
      %p392 = scmp.ne.s32.totalorder %s380, %s381
      %p393 = scmp.eq.s32.totalorder %s35, 3
      %p394 = por %p392, %p393
      %p396 = scmp.ne.s32.totalorder %s381, %s395
      %p397 = scmp.eq.s32.totalorder %s35, 0
      %p398 = por %p396, %p397
      %s400 = sadd.s32 %s399, 1
      %p403 = scmp.eq.s32.totalorder %s29, 3
      %p404 = scmp.ne.s32.totalorder %s399, %s401
      %p405 = scmp.eq.s32.totalorder %s29, 0
      %p406 = por %p404, %p405
      %p407 = scmp.ne.s32.totalorder %s399, %s401
      %p408 = scmp.eq.s32.totalorder %s34, 3
      %p409 = por %p407, %p408
      %p410 = scmp.ne.s32.totalorder %s401, %s402
      %p411 = scmp.eq.s32.totalorder %s34, 0
      %p412 = por %p410, %p411
      %p413 = scmp.ne.s32.totalorder %s401, %s402
      %p414 = scmp.eq.s32.totalorder %s35, 3
      %p415 = por %p413, %p414
      %p417 = scmp.ne.s32.totalorder %s402, %s416
      %p418 = scmp.eq.s32.totalorder %s35, 0
      %p419 = por %p417, %p418
      %s421 = sadd.s32 %s420, 1
      %p424 = scmp.eq.s32.totalorder %s29, 3
      %p425 = scmp.ne.s32.totalorder %s420, %s422
      %p426 = scmp.eq.s32.totalorder %s29, 0
      %p427 = por %p425, %p426
      %p428 = scmp.ne.s32.totalorder %s420, %s422
      %p429 = scmp.eq.s32.totalorder %s34, 3
      %p430 = por %p428, %p429
      %p431 = scmp.ne.s32.totalorder %s422, %s423
      %p432 = scmp.eq.s32.totalorder %s34, 0
      %p433 = por %p431, %p432
      %p434 = scmp.ne.s32.totalorder %s422, %s423
      %p435 = scmp.eq.s32.totalorder %s35, 3
      %p436 = por %p434, %p435
      %p438 = scmp.ne.s32.totalorder %s423, %s437
      %p439 = scmp.eq.s32.totalorder %s35, 0
      %p440 = por %p438, %p439
      %s442 = sadd.s32 %s441, 1
      %p445 = scmp.eq.s32.totalorder %s29, 3
      %p446 = scmp.ne.s32.totalorder %s441, %s443
      %p447 = scmp.eq.s32.totalorder %s29, 0
      %p448 = por %p446, %p447
      %p449 = scmp.ne.s32.totalorder %s441, %s443
      %p450 = scmp.eq.s32.totalorder %s34, 3
      %p451 = por %p449, %p450
      %p452 = scmp.ne.s32.totalorder %s443, %s444
      %p453 = scmp.eq.s32.totalorder %s34, 0
      %p454 = por %p452, %p453
      %p455 = scmp.ne.s32.totalorder %s443, %s444
      %p456 = scmp.eq.s32.totalorder %s35, 3
      %p457 = por %p455, %p456
      %p459 = scmp.ne.s32.totalorder %s444, %s458
      %p460 = scmp.eq.s32.totalorder %s35, 0
      %p461 = por %p459, %p460
      %s462 = ssub.s32 %s29, %s36
      %p463 = scmp.eq.s32.totalorder %s462, 0
      %s465 = sadd.s32 %s464, 1
      %s466 = scalar_select %p463, %s464, %s465
      %p469 = pneg %p463
      %p470 = scmp.eq.s32.totalorder %s29, 3
      %p471 = por %p469, %p470
      %p472 = scmp.ne.s32.totalorder %s464, %s467
      %p473 = scmp.eq.s32.totalorder %s29, 0
      %p474 = por %p472, %p473
      %p475 = scmp.ne.s32.totalorder %s464, %s467
      %p476 = scmp.eq.s32.totalorder %s34, 3
      %p477 = por %p475, %p476
      %p478 = scmp.ne.s32.totalorder %s467, %s468
      %p479 = scmp.eq.s32.totalorder %s34, 0
      %p480 = por %p478, %p479
      %p481 = scmp.ne.s32.totalorder %s467, %s468
      %p482 = scmp.eq.s32.totalorder %s35, 3
      %p483 = por %p481, %p482
      %p485 = scmp.ne.s32.totalorder %s468, %s484
      %p486 = scmp.eq.s32.totalorder %s35, 0
      %p487 = por %p485, %p486
      %p488 = scmp.le.s32.totalorder 1, %s29
      %p489 = scmp.lt.s32.totalorder %s29, 5
      %p490 = pnand %p488, %p489
      %p491 = pneg %p490
      // Predicated region
      $region9: #{tpu_custom_call.1} parent=5 // pred_check
        _
      $region10: #{tpu_custom_call.1} parent=5 // pred_check_branch
        %493 = sbr.rel (%p490) target = $region12
      $region11: #{tpu_custom_call.1} parent=5 // pred_region
        %s494 = ssub.s32 %s29, 1
        // Predicated region
        $region13: #{tpu_custom_call.1} parent=11 // pred_check
          %p495 = pneg %p76
        $region14: #{tpu_custom_call.1} parent=11 // pred_check_branch
          %497 = sbr.rel (%p495) target = $region16
        $region15: #{tpu_custom_call.1} parent=11 // pred_region
          _
        $region16: #{tpu_custom_call.1} parent=11 // pred_fallthru
          _
        // Predicated region
        $region17: #{tpu_custom_call.1} parent=11 // pred_check
          %p498 = pneg %p97
        $region18: #{tpu_custom_call.1} parent=11 // pred_check_branch
          %500 = sbr.rel (%p498) target = $region20
        $region19: #{tpu_custom_call.1} parent=11 // pred_region
          _
        $region20: #{tpu_custom_call.1} parent=11 // pred_fallthru
          _
        // Predicated region
        $region21: #{tpu_custom_call.1} parent=11 // pred_check
          %p501 = pneg %p118
        $region22: #{tpu_custom_call.1} parent=11 // pred_check_branch
          %503 = sbr.rel (%p501) target = $region24
        $region23: #{tpu_custom_call.1} parent=11 // pred_region
          _
        $region24: #{tpu_custom_call.1} parent=11 // pred_fallthru
          _
        // Predicated region
        $region25: #{tpu_custom_call.1} parent=11 // pred_check
          %p504 = pneg %p139
        $region26: #{tpu_custom_call.1} parent=11 // pred_check_branch
          %506 = sbr.rel (%p504) target = $region28
        $region27: #{tpu_custom_call.1} parent=11 // pred_region
          _
        $region28: #{tpu_custom_call.1} parent=11 // pred_fallthru
          _
        // Predicated region
        $region29: #{tpu_custom_call.1} parent=11 // pred_check
          %p507 = pneg %p160
        $region30: #{tpu_custom_call.1} parent=11 // pred_check_branch
          %509 = sbr.rel (%p507) target = $region32
        $region31: #{tpu_custom_call.1} parent=11 // pred_region
          _
        $region32: #{tpu_custom_call.1} parent=11 // pred_fallthru
          _
        // Predicated region
        $region33: #{tpu_custom_call.1} parent=11 // pred_check
          %p510 = pneg %p181
        $region34: #{tpu_custom_call.1} parent=11 // pred_check_branch
          %512 = sbr.rel (%p510) target = $region36
        $region35: #{tpu_custom_call.1} parent=11 // pred_region
          _
        $region36: #{tpu_custom_call.1} parent=11 // pred_fallthru
          _
        // Predicated region
        $region37: #{tpu_custom_call.1} parent=11 // pred_check
          %p513 = pneg %p202
        $region38: #{tpu_custom_call.1} parent=11 // pred_check_branch
          %515 = sbr.rel (%p513) target = $region40
        $region39: #{tpu_custom_call.1} parent=11 // pred_region
          _
        $region40: #{tpu_custom_call.1} parent=11 // pred_fallthru
          _
        // Predicated region
        $region41: #{tpu_custom_call.1} parent=11 // pred_check
          %p516 = pneg %p223
        $region42: #{tpu_custom_call.1} parent=11 // pred_check_branch
          %518 = sbr.rel (%p516) target = $region44
        $region43: #{tpu_custom_call.1} parent=11 // pred_region
          _
        $region44: #{tpu_custom_call.1} parent=11 // pred_fallthru
          _
        // Predicated region
        $region45: #{tpu_custom_call.1} parent=11 // pred_check
          %p519 = pneg %p244
        $region46: #{tpu_custom_call.1} parent=11 // pred_check_branch
          %521 = sbr.rel (%p519) target = $region48
        $region47: #{tpu_custom_call.1} parent=11 // pred_region
          _
        $region48: #{tpu_custom_call.1} parent=11 // pred_fallthru
          _
        // Predicated region
        $region49: #{tpu_custom_call.1} parent=11 // pred_check
          %p522 = pneg %p265
        $region50: #{tpu_custom_call.1} parent=11 // pred_check_branch
          %524 = sbr.rel (%p522) target = $region52
        $region51: #{tpu_custom_call.1} parent=11 // pred_region
          _
        $region52: #{tpu_custom_call.1} parent=11 // pred_fallthru
          _
        // Predicated region
        $region53: #{tpu_custom_call.1} parent=11 // pred_check
          %p525 = pneg %p286
        $region54: #{tpu_custom_call.1} parent=11 // pred_check_branch
          %527 = sbr.rel (%p525) target = $region56
        $region55: #{tpu_custom_call.1} parent=11 // pred_region
          _
        $region56: #{tpu_custom_call.1} parent=11 // pred_fallthru
          _
        // Predicated region
        $region57: #{tpu_custom_call.1} parent=11 // pred_check
          %p528 = pneg %p307
        $region58: #{tpu_custom_call.1} parent=11 // pred_check_branch
          %530 = sbr.rel (%p528) target = $region60
        $region59: #{tpu_custom_call.1} parent=11 // pred_region
          _
        $region60: #{tpu_custom_call.1} parent=11 // pred_fallthru
          _
        // Predicated region
        $region61: #{tpu_custom_call.1} parent=11 // pred_check
          %p531 = pneg %p328
        $region62: #{tpu_custom_call.1} parent=11 // pred_check_branch
          %533 = sbr.rel (%p531) target = $region64
        $region63: #{tpu_custom_call.1} parent=11 // pred_region
          _
        $region64: #{tpu_custom_call.1} parent=11 // pred_fallthru
          _
        // Predicated region
        $region65: #{tpu_custom_call.1} parent=11 // pred_check
          %p534 = pneg %p349
        $region66: #{tpu_custom_call.1} parent=11 // pred_check_branch
          %536 = sbr.rel (%p534) target = $region68
        $region67: #{tpu_custom_call.1} parent=11 // pred_region
          _
        $region68: #{tpu_custom_call.1} parent=11 // pred_fallthru
          _
        // Predicated region
        $region69: #{tpu_custom_call.1} parent=11 // pred_check
          %p537 = pneg %p370
        $region70: #{tpu_custom_call.1} parent=11 // pred_check_branch
          %539 = sbr.rel (%p537) target = $region72
        $region71: #{tpu_custom_call.1} parent=11 // pred_region
          _
        $region72: #{tpu_custom_call.1} parent=11 // pred_fallthru
          _
        // Predicated region
        $region73: #{tpu_custom_call.1} parent=11 // pred_check
          %p540 = pneg %p391
        $region74: #{tpu_custom_call.1} parent=11 // pred_check_branch
          %542 = sbr.rel (%p540) target = $region76
        $region75: #{tpu_custom_call.1} parent=11 // pred_region
          _
        $region76: #{tpu_custom_call.1} parent=11 // pred_fallthru
          _
        // Predicated region
        $region77: #{tpu_custom_call.1} parent=11 // pred_check
          %p543 = pneg %p412
        $region78: #{tpu_custom_call.1} parent=11 // pred_check_branch
          %545 = sbr.rel (%p543) target = $region80
        $region79: #{tpu_custom_call.1} parent=11 // pred_region
          _
        $region80: #{tpu_custom_call.1} parent=11 // pred_fallthru
          _
        // Predicated region
        $region81: #{tpu_custom_call.1} parent=11 // pred_check
          %p546 = pneg %p433
        $region82: #{tpu_custom_call.1} parent=11 // pred_check_branch
          %548 = sbr.rel (%p546) target = $region84
        $region83: #{tpu_custom_call.1} parent=11 // pred_region
          _
        $region84: #{tpu_custom_call.1} parent=11 // pred_fallthru
          _
        // Predicated region
        $region85: #{tpu_custom_call.1} parent=11 // pred_check
          %p549 = pneg %p454
        $region86: #{tpu_custom_call.1} parent=11 // pred_check_branch
          %551 = sbr.rel (%p549) target = $region88
        $region87: #{tpu_custom_call.1} parent=11 // pred_region
          _
        $region88: #{tpu_custom_call.1} parent=11 // pred_fallthru
          _
      $region12: #{tpu_custom_call.1} parent=5 // pred_fallthru
        _
      %p552 = scmp.lt.s32.totalorder %s29, 4
      // Predicated region
      $region89: #{tpu_custom_call.1} parent=5 // pred_check
        %p553 = pneg %p552
      $region90: #{tpu_custom_call.1} parent=5 // pred_check_branch
        %555 = sbr.rel (%p553) target = $region92
      $region91: #{tpu_custom_call.1} parent=5 // pred_region
        // Predicated region
        $region93: #{tpu_custom_call.1} parent=91 // pred_check
          %p556 = pneg %p49
        $region94: #{tpu_custom_call.1} parent=91 // pred_check_branch
          %558 = sbr.rel (%p556) target = $region96
        $region95: #{tpu_custom_call.1} parent=91 // pred_region
          %p559 = scmp.lt.s32.totalorder %s29, 3
          %s560 = scalar_select %p559, %s29, 3
          %s561 = smul.addr %s560, 2
          %s562 = smul.addr %s561, 8
          %s563 = scalar_lea.vmem %s0, %s562
        $region96: #{tpu_custom_call.1} parent=91 // pred_fallthru
          _
      $region92: #{tpu_custom_call.1} parent=5 // pred_fallthru
        _
      %p564 = scmp.le.s32.totalorder 1, %s29
      %p565 = scmp.lt.s32.totalorder %s29, 5
      %p566 = pnand %p564, %p565
      %p567 = pneg %p566
      // Predicated region
      $region97: #{tpu_custom_call.1} parent=5 // pred_check
        _
      $region98: #{tpu_custom_call.1} parent=5 // pred_check_branch
        %569 = sbr.rel (%p566) target = $region100
      $region99: #{tpu_custom_call.1} parent=5 // pred_region
        %s570 = ssub.s32 %s29, 1
        %p571 = scmp.lt.s32.totalorder %s34, 3
        %s572 = scalar_select %p571, %s34, 3
        %s573 = smul.addr %s572, 2
        %s574 = smul.addr %s573, 8
        %s575 = scalar_lea.vmem %s0, %s574
        %p576 = pneg %p55
        %p577 = pneg %p52
        %p578 = pneg %p76
        %p579 = pneg %p73
        %p580 = pneg %p97
        %p581 = pneg %p94
        %p582 = pneg %p118
        %p583 = pneg %p115
        %p584 = pneg %p139
        %p585 = pneg %p136
        %p586 = pneg %p160
        %p587 = pneg %p157
        %p588 = pneg %p181
        %p589 = pneg %p178
        %p590 = pneg %p202
        %p591 = pneg %p199
        %p592 = pneg %p223
        %p593 = pneg %p220
        %p594 = pneg %p244
        %p595 = pneg %p241
        %p596 = pneg %p265
        %p597 = pneg %p262
        %p598 = pneg %p286
        %p599 = pneg %p283
        %p600 = pneg %p307
        %p601 = pneg %p304
        %p602 = pneg %p328
        %p603 = pneg %p325
        %p604 = pneg %p349
        %p605 = pneg %p346
        %p606 = pneg %p370
        %p607 = pneg %p367
        %p608 = pneg %p391
        %p609 = pneg %p388
        %p610 = pneg %p412
        %p611 = pneg %p409
        %p612 = pneg %p433
        %p613 = pneg %p430
        %p614 = pneg %p454
        %p615 = pneg %p451
        %p616 = pneg %p480
        %p617 = pneg %p477
        %s618 = sand.u32 %s467, 1
        %s619 = scalar_lea.sflag [#allocation3], %s618
        %s620 = sand.u32 %s467, 1
        %s621 = scalar_lea.vmem [#allocation2], %s620
        %p622 = scmp.lt.s32.totalorder %s34, 3
        %s623 = scalar_select %p622, %s34, 3
        %s624 = smul.addr %s623, 2
        %s625 = smul.addr %s624, 8
        %s626 = scalar_lea.vmem %s0, %s625
        %v627 = vld [vmem:[%s626] sm:$0xff]
        %v628 = vld [vmem:[%s626 + $0x8] sm:$0xff]
        %v629 = vld [vmem:[%s1] sm:$0xff]
        %v630 = vld [vmem:[%s1 + $0x8] sm:$0xff]
        %v631 = vadd.f32 %v627, %v629
        %v632 = vadd.f32 %v628, %v630
        %v633 = vld [vmem:[%s2] sm:$0xff]
        %v634 = vld [vmem:[%s2 + $0x8] sm:$0xff]
        %v635 = vld [vmem:[%s2 + $0x10] sm:$0xff]
        %v636 = vld [vmem:[%s2 + $0x18] sm:$0xff]
        %v637 = vld [vmem:[%s3] sm:$0x1]
        %v639 = vlaneseq
        %v640 = vshrl.u32 %v639, 7
        %v641 = vsub.s32 0, %v640
        %v642 = vrot.slane %v637, %v641
        %vm644 = vcmask 261120
        %v646 = vsel %vm644, %v631, 0
        %v649 = vsel %vm644, %v632, 0
        %651 = vmatprep.subr.mxu0 0.0
        %652 = vmatpush1.msra.mxu0 0.0
        %653 = vmatprep.subr.mxu0 0.0
        %654 = vmatpush1.msra.mxu0 0.0
        %655 = vmatprep.subr.mxu0 0.0
        %656 = vmatpush1.msra.mxu0 0.0
        %657 = vmatprep.subr.mxu0 0.0
        %658 = vmatpush1.msra.mxu0 0.0
        %659 = vmatprep.subr.mxu0 0.0
        %660 = vmatpush1.msra.mxu0 0.0
        %661 = vmatprep.subr.mxu0 0.0
        %662 = vmatpush1.msra.mxu0 0.0
        %663 = vmatprep.subr.mxu0 0.0
        %664 = vmatpush1.msra.mxu0 0.0
        %665 = vmatprep.subr.mxu0 0.0
        %666 = vmatpush1.msra.mxu0 0.0
        %667 = vmatprep.subr.mxu0 0.0
        %668 = vmatpush1.msra.mxu0 0.0
        %669 = vmatprep.subr.mxu0 0.0
        %670 = vmatpush1.msra.mxu0 0.0
        %671 = vmatprep.subr.mxu0 0.0
        %672 = vmatpush1.msra.mxu0 0.0
        %673 = vmatprep.subr.mxu0 0.0
        %674 = vmatpush1.msra.mxu0 0.0
        %675 = vmatprep.subr.mxu0 0.0
        %676 = vmatpush1.msra.mxu0 %v636
        %677 = vmatprep.subr.mxu0 0.0
        %678 = vmatpush1.msra.mxu0 %v635
        %679 = vmatprep.subr.mxu0 0.0
        %680 = vmatpush1.msra.mxu0 %v634
        %681 = vmatprep.subr.mxu0 0.0
        %682 = vmatpush1.msra.mxu0 %v633
        %683 = vmatprep.subr.mxu0 0.0
        %684 = vmatpush2.msra.mxu0 0.0
        %685 = vmatprep.subr.mxu0 0.0
        %686 = vmatpush2.msra.mxu0 0.0
        %687 = vmatprep.subr.mxu0 0.0
        %688 = vmatpush2.msra.mxu0 0.0
        %689 = vmatprep.subr.mxu0 0.0
        %690 = vmatpush2.msra.mxu0 0.0
        %691 = vmatprep.subr.mxu0 0.0
        %692 = vmatpush2.msra.mxu0 0.0
        %693 = vmatprep.subr.mxu0 0.0
        %694 = vmatpush2.msra.mxu0 0.0
        %695 = vmatprep.subr.mxu0 0.0
        %696 = vmatpush2.msra.mxu0 0.0
        %697 = vmatprep.subr.mxu0 0.0
        %698 = vmatpush2.msra.mxu0 0.0
        %699 = vmatprep.subr.mxu0 0.0
        %700 = vmatpush2.msra.mxu0 0.0
        %701 = vmatprep.subr.mxu0 0.0
        %702 = vmatpush2.msra.mxu0 0.0
        %703 = vmatprep.subr.mxu0 0.0
        %704 = vmatpush2.msra.mxu0 0.0
        %705 = vmatprep.subr.mxu0 0.0
        %706 = vmatpush2.msra.mxu0 0.0
        %707 = vmatprep.subr.mxu0 0.0
        %708 = vmatpush2.msra.mxu0 0.0
        %709 = vmatprep.subr.mxu0 0.0
        %710 = vmatpush2.msra.mxu0 0.0
        %711 = vmatprep.subr.mxu0 0.0
        %712 = vmatpush2.msra.mxu0 0.0
        %713 = vmatprep.subr.mxu0 0.0
        %714 = vmatpush2.msra.mxu0 0.0
        %715 = vmatprep.mubr.f32.mxu0 0.0
        %716 = vmatmul.mubr.f32.gmra.mxu0 %v646
        %v717 = vpop.f32.mrf.mxu0
        %v718 = vadd.f32 %v642, %v717
        %v719 = vpop.f32.mrf.mxu0
        %720 = vmatprep.mubr.f32.mxu0 0.0
        %721 = vmatmul.mubr.f32.gmra.mxu0 %v649
        %v722 = vpop.f32.mrf.mxu0
        %v723 = vadd.f32 %v642, %v722
        %v724 = vpop.f32.mrf.mxu0
        %725 = vdwg.mxu0
        %v726 = vld [vmem:[%s4] sm:$0xff]
        %v727 = vld [vmem:[%s4 + $0x8] sm:$0xff]
        %v728 = vld [vmem:[%s4 + $0x10] sm:$0xff]
        %v729 = vld [vmem:[%s4 + $0x18] sm:$0xff]
        %v730 = vld [vmem:[%s5] sm:$0x1]
        %v732 = vlaneseq
        %v733 = vshrl.u32 %v732, 7
        %v734 = vsub.s32 0, %v733
        %v735 = vrot.slane %v730, %v734
        %737 = vmatprep.subr.mxu0 0.0
        %738 = vmatpush1.msra.mxu0 0.0
        %739 = vmatprep.subr.mxu0 0.0
        %740 = vmatpush1.msra.mxu0 0.0
        %741 = vmatprep.subr.mxu0 0.0
        %742 = vmatpush1.msra.mxu0 0.0
        %743 = vmatprep.subr.mxu0 0.0
        %744 = vmatpush1.msra.mxu0 0.0
        %745 = vmatprep.subr.mxu0 0.0
        %746 = vmatpush1.msra.mxu0 0.0
        %747 = vmatprep.subr.mxu0 0.0
        %748 = vmatpush1.msra.mxu0 0.0
        %749 = vmatprep.subr.mxu0 0.0
        %750 = vmatpush1.msra.mxu0 0.0
        %751 = vmatprep.subr.mxu0 0.0
        %752 = vmatpush1.msra.mxu0 0.0
        %753 = vmatprep.subr.mxu0 0.0
        %754 = vmatpush1.msra.mxu0 0.0
        %755 = vmatprep.subr.mxu0 0.0
        %756 = vmatpush1.msra.mxu0 0.0
        %757 = vmatprep.subr.mxu0 0.0
        %758 = vmatpush1.msra.mxu0 0.0
        %759 = vmatprep.subr.mxu0 0.0
        %760 = vmatpush1.msra.mxu0 0.0
        %761 = vmatprep.subr.mxu0 0.0
        %762 = vmatpush1.msra.mxu0 %v729
        %763 = vmatprep.subr.mxu0 0.0
        %764 = vmatpush1.msra.mxu0 %v728
        %765 = vmatprep.subr.mxu0 0.0
        %766 = vmatpush1.msra.mxu0 %v727
        %767 = vmatprep.subr.mxu0 0.0
        %768 = vmatpush1.msra.mxu0 %v726
        %769 = vmatprep.subr.mxu0 0.0
        %770 = vmatpush2.msra.mxu0 0.0
        %771 = vmatprep.subr.mxu0 0.0
        %772 = vmatpush2.msra.mxu0 0.0
        %773 = vmatprep.subr.mxu0 0.0
        %774 = vmatpush2.msra.mxu0 0.0
        %775 = vmatprep.subr.mxu0 0.0
        %776 = vmatpush2.msra.mxu0 0.0
        %777 = vmatprep.subr.mxu0 0.0
        %778 = vmatpush2.msra.mxu0 0.0
        %779 = vmatprep.subr.mxu0 0.0
        %780 = vmatpush2.msra.mxu0 0.0
        %781 = vmatprep.subr.mxu0 0.0
        %782 = vmatpush2.msra.mxu0 0.0
        %783 = vmatprep.subr.mxu0 0.0
        %784 = vmatpush2.msra.mxu0 0.0
        %785 = vmatprep.subr.mxu0 0.0
        %786 = vmatpush2.msra.mxu0 0.0
        %787 = vmatprep.subr.mxu0 0.0
        %788 = vmatpush2.msra.mxu0 0.0
        %789 = vmatprep.subr.mxu0 0.0
        %790 = vmatpush2.msra.mxu0 0.0
        %791 = vmatprep.subr.mxu0 0.0
        %792 = vmatpush2.msra.mxu0 0.0
        %793 = vmatprep.subr.mxu0 0.0
        %794 = vmatpush2.msra.mxu0 0.0
        %795 = vmatprep.subr.mxu0 0.0
        %796 = vmatpush2.msra.mxu0 0.0
        %797 = vmatprep.subr.mxu0 0.0
        %798 = vmatpush2.msra.mxu0 0.0
        %799 = vmatprep.subr.mxu0 0.0
        %800 = vmatpush2.msra.mxu0 0.0
        %801 = vmatprep.mubr.f32.mxu0 0.0
        %802 = vmatmul.mubr.f32.gmra.mxu0 %v646
        %v803 = vpop.f32.mrf.mxu0
        %v804 = vadd.f32 %v735, %v803
        %v805 = vpop.f32.mrf.mxu0
        %806 = vmatprep.mubr.f32.mxu0 0.0
        %807 = vmatmul.mubr.f32.gmra.mxu0 %v649
        %v808 = vpop.f32.mrf.mxu0
        %v809 = vadd.f32 %v735, %v808
        %v810 = vpop.f32.mrf.mxu0
        %811 = vdwg.mxu0
        %v812 = vld [vmem:[%s6] sm:$0xff]
        %v813 = vld [vmem:[%s6 + $0x8] sm:$0xff]
        %v814 = vld [vmem:[%s6 + $0x10] sm:$0xff]
        %v815 = vld [vmem:[%s6 + $0x18] sm:$0xff]
        %v816 = vld [vmem:[%s7] sm:$0x1]
        %v818 = vlaneseq
        %v819 = vshrl.u32 %v818, 7
        %v820 = vsub.s32 0, %v819
        %v821 = vrot.slane %v816, %v820
        %823 = vmatprep.subr.mxu0 0.0
        %824 = vmatpush1.msra.mxu0 0.0
        %825 = vmatprep.subr.mxu0 0.0
        %826 = vmatpush1.msra.mxu0 0.0
        %827 = vmatprep.subr.mxu0 0.0
        %828 = vmatpush1.msra.mxu0 0.0
        %829 = vmatprep.subr.mxu0 0.0
        %830 = vmatpush1.msra.mxu0 0.0
        %831 = vmatprep.subr.mxu0 0.0
        %832 = vmatpush1.msra.mxu0 0.0
        %833 = vmatprep.subr.mxu0 0.0
        %834 = vmatpush1.msra.mxu0 0.0
        %835 = vmatprep.subr.mxu0 0.0
        %836 = vmatpush1.msra.mxu0 0.0
        %837 = vmatprep.subr.mxu0 0.0
        %838 = vmatpush1.msra.mxu0 0.0
        %839 = vmatprep.subr.mxu0 0.0
        %840 = vmatpush1.msra.mxu0 0.0
        %841 = vmatprep.subr.mxu0 0.0
        %842 = vmatpush1.msra.mxu0 0.0
        %843 = vmatprep.subr.mxu0 0.0
        %844 = vmatpush1.msra.mxu0 0.0
        %845 = vmatprep.subr.mxu0 0.0
        %846 = vmatpush1.msra.mxu0 0.0
        %847 = vmatprep.subr.mxu0 0.0
        %848 = vmatpush1.msra.mxu0 %v815
        %849 = vmatprep.subr.mxu0 0.0
        %850 = vmatpush1.msra.mxu0 %v814
        %851 = vmatprep.subr.mxu0 0.0
        %852 = vmatpush1.msra.mxu0 %v813
        %853 = vmatprep.subr.mxu0 0.0
        %854 = vmatpush1.msra.mxu0 %v812
        %855 = vmatprep.subr.mxu0 0.0
        %856 = vmatpush2.msra.mxu0 0.0
        %857 = vmatprep.subr.mxu0 0.0
        %858 = vmatpush2.msra.mxu0 0.0
        %859 = vmatprep.subr.mxu0 0.0
        %860 = vmatpush2.msra.mxu0 0.0
        %861 = vmatprep.subr.mxu0 0.0
        %862 = vmatpush2.msra.mxu0 0.0
        %863 = vmatprep.subr.mxu0 0.0
        %864 = vmatpush2.msra.mxu0 0.0
        %865 = vmatprep.subr.mxu0 0.0
        %866 = vmatpush2.msra.mxu0 0.0
        %867 = vmatprep.subr.mxu0 0.0
        %868 = vmatpush2.msra.mxu0 0.0
        %869 = vmatprep.subr.mxu0 0.0
        %870 = vmatpush2.msra.mxu0 0.0
        %871 = vmatprep.subr.mxu0 0.0
        %872 = vmatpush2.msra.mxu0 0.0
        %873 = vmatprep.subr.mxu0 0.0
        %874 = vmatpush2.msra.mxu0 0.0
        %875 = vmatprep.subr.mxu0 0.0
        %876 = vmatpush2.msra.mxu0 0.0
        %877 = vmatprep.subr.mxu0 0.0
        %878 = vmatpush2.msra.mxu0 0.0
        %879 = vmatprep.subr.mxu0 0.0
        %880 = vmatpush2.msra.mxu0 0.0
        %881 = vmatprep.subr.mxu0 0.0
        %882 = vmatpush2.msra.mxu0 0.0
        %883 = vmatprep.subr.mxu0 0.0
        %884 = vmatpush2.msra.mxu0 0.0
        %885 = vmatprep.subr.mxu0 0.0
        %886 = vmatpush2.msra.mxu0 0.0
        %887 = vmatprep.mubr.f32.mxu0 0.0
        %888 = vmatmul.mubr.f32.gmra.mxu0 %v646
        %v889 = vpop.f32.mrf.mxu0
        %v890 = vadd.f32 %v821, %v889
        %v891 = vpop.f32.mrf.mxu0
        %892 = vmatprep.mubr.f32.mxu0 0.0
        %893 = vmatmul.mubr.f32.gmra.mxu0 %v649
        %v894 = vpop.f32.mrf.mxu0
        %v895 = vadd.f32 %v821, %v894
        %v896 = vpop.f32.mrf.mxu0
        %897 = vdwg.mxu0
        %vm898 = vcmask 130048
        %v900 = vsel %vm898, %v718, 0
        %v903 = vsel %vm898, %v723, 0
        %v906 = vsel %vm898, %v804, 0
        %v909 = vsel %vm898, %v809, 0
        %911 = vmatprep.subr.mxu0 0.0
        %912 = vmatpush1.xpose.msra.mxu0 0.0
        %913 = vmatprep.subr.mxu0 0.0
        %914 = vmatpush1.xpose.msra.mxu0 0.0
        %915 = vmatprep.subr.mxu0 0.0
        %916 = vmatpush1.xpose.msra.mxu0 0.0
        %917 = vmatprep.subr.mxu0 0.0
        %918 = vmatpush1.xpose.msra.mxu0 0.0
        %919 = vmatprep.subr.mxu0 0.0
        %920 = vmatpush1.xpose.msra.mxu0 0.0
        %921 = vmatprep.subr.mxu0 0.0
        %922 = vmatpush1.xpose.msra.mxu0 0.0
        %923 = vmatprep.subr.mxu0 0.0
        %924 = vmatpush1.xpose.msra.mxu0 0.0
        %925 = vmatprep.subr.mxu0 0.0
        %926 = vmatpush1.xpose.msra.mxu0 0.0
        %927 = vmatprep.subr.mxu0 0.0
        %928 = vmatpush1.xpose.msra.mxu0 0.0
        %929 = vmatprep.subr.mxu0 0.0
        %930 = vmatpush1.xpose.msra.mxu0 0.0
        %931 = vmatprep.subr.mxu0 0.0
        %932 = vmatpush1.xpose.msra.mxu0 0.0
        %933 = vmatprep.subr.mxu0 0.0
        %934 = vmatpush1.xpose.msra.mxu0 0.0
        %935 = vmatprep.subr.mxu0 0.0
        %936 = vmatpush1.xpose.msra.mxu0 0.0
        %937 = vmatprep.subr.mxu0 0.0
        %938 = vmatpush1.xpose.msra.mxu0 0.0
        %939 = vmatprep.subr.mxu0 0.0
        %940 = vmatpush1.xpose.msra.mxu0 %v909
        %941 = vmatprep.subr.mxu0 0.0
        %942 = vmatpush1.xpose.msra.mxu0 %v906
        %943 = vmatprep.subr.mxu0 0.0
        %944 = vmatpush2.xpose.msra.mxu0 0.0
        %945 = vmatprep.subr.mxu0 0.0
        %946 = vmatpush2.xpose.msra.mxu0 0.0
        %947 = vmatprep.subr.mxu0 0.0
        %948 = vmatpush2.xpose.msra.mxu0 0.0
        %949 = vmatprep.subr.mxu0 0.0
        %950 = vmatpush2.xpose.msra.mxu0 0.0
        %951 = vmatprep.subr.mxu0 0.0
        %952 = vmatpush2.xpose.msra.mxu0 0.0
        %953 = vmatprep.subr.mxu0 0.0
        %954 = vmatpush2.xpose.msra.mxu0 0.0
        %955 = vmatprep.subr.mxu0 0.0
        %956 = vmatpush2.xpose.msra.mxu0 0.0
        %957 = vmatprep.subr.mxu0 0.0
        %958 = vmatpush2.xpose.msra.mxu0 0.0
        %959 = vmatprep.subr.mxu0 0.0
        %960 = vmatpush2.xpose.msra.mxu0 0.0
        %961 = vmatprep.subr.mxu0 0.0
        %962 = vmatpush2.xpose.msra.mxu0 0.0
        %963 = vmatprep.subr.mxu0 0.0
        %964 = vmatpush2.xpose.msra.mxu0 0.0
        %965 = vmatprep.subr.mxu0 0.0
        %966 = vmatpush2.xpose.msra.mxu0 0.0
        %967 = vmatprep.subr.mxu0 0.0
        %968 = vmatpush2.xpose.msra.mxu0 0.0
        %969 = vmatprep.subr.mxu0 0.0
        %970 = vmatpush2.xpose.msra.mxu0 0.0
        %971 = vmatprep.subr.mxu0 0.0
        %972 = vmatpush2.xpose.msra.mxu0 0.0
        %973 = vmatprep.subr.mxu0 0.0
        %974 = vmatpush2.xpose.msra.mxu0 0.0
        %975 = vmatprep.mubr.f32.mxu0 0.0
        %976 = vmatmul.mubr.f32.gmra.mxu0 %v900
        %v977 = vpop.f32.mrf.mxu0
        %v978 = vadd.f32 0.0, %v977
        %v979 = vpop.f32.mrf.mxu0
        %980 = vmatprep.mubr.f32.mxu0 0.0
        %981 = vmatmul.mubr.f32.gmra.mxu0 %v903
        %v982 = vpop.f32.mrf.mxu0
        %v983 = vadd.f32 0.0, %v982
        %v984 = vpop.f32.mrf.mxu0
        %985 = vdwg.mxu0
        %v986 = vmul.f32 %v978, 0.25
        %v987 = vmul.f32 %v983, 0.25
        %v988 = vsel %vm898, %v986, -inf
        %989 = vmax.xlane.f32.xlu0 %v988
        %v990 = vpop.xlane.xlu0 %989
        %v991 = vsel %vm898, %v987, -inf
        %992 = vmax.xlane.f32.xlu0 %v991
        %v993 = vpop.xlane.xlu0 %992
        %v994 = vsub.f32 %v986, %v990
        %v995 = vsub.f32 %v987, %v993
        %v996 = vmul.f32 %v994, 1.442695
        %v997 = vpow.pop %v996
        %v998 = vmul.f32 %v995, 1.442695
        %v999 = vpow.pop %v998
        %v1000 = vsel %vm898, %v997, 0.0
        %1001 = vadd.xlane.f32.xlu0 %v1000
        %v1002 = vpop.xlane.xlu0 %1001
        %v1003 = vsel %vm898, %v999, 0.0
        %1004 = vadd.xlane.f32.xlu0 %v1003
        %v1005 = vpop.xlane.xlu0 %1004
        %v1006 = vrcp.pop %v1002
        %v1007 = vmul.f32 %v997, %v1006
        %v1008 = vrcp.pop %v1005
        %v1009 = vmul.f32 %v999, %v1008
        %v1011 = vsel %vm898, %v1007, 0
        %v1014 = vsel %vm898, %v1009, 0
        %1016 = vmatprep.subr.mxu0 0.0
        %1017 = vmatpush1.msra.mxu0 0.0
        %1018 = vmatprep.subr.mxu0 0.0
        %1019 = vmatpush1.msra.mxu0 0.0
        %1020 = vmatprep.subr.mxu0 0.0
        %1021 = vmatpush1.msra.mxu0 0.0
        %1022 = vmatprep.subr.mxu0 0.0
        %1023 = vmatpush1.msra.mxu0 0.0
        %1024 = vmatprep.subr.mxu0 0.0
        %1025 = vmatpush1.msra.mxu0 0.0
        %1026 = vmatprep.subr.mxu0 0.0
        %1027 = vmatpush1.msra.mxu0 0.0
        %1028 = vmatprep.subr.mxu0 0.0
        %1029 = vmatpush1.msra.mxu0 0.0
        %1030 = vmatprep.subr.mxu0 0.0
        %1031 = vmatpush1.msra.mxu0 0.0
        %1032 = vmatprep.subr.mxu0 0.0
        %1033 = vmatpush1.msra.mxu0 0.0
        %1034 = vmatprep.subr.mxu0 0.0
        %1035 = vmatpush1.msra.mxu0 0.0
        %1036 = vmatprep.subr.mxu0 0.0
        %1037 = vmatpush1.msra.mxu0 0.0
        %1038 = vmatprep.subr.mxu0 0.0
        %1039 = vmatpush1.msra.mxu0 0.0
        %1040 = vmatprep.subr.mxu0 0.0
        %1041 = vmatpush1.msra.mxu0 0.0
        %1042 = vmatprep.subr.mxu0 0.0
        %1043 = vmatpush1.msra.mxu0 0.0
        %1044 = vmatprep.subr.mxu0 0.0
        %1045 = vmatpush1.msra.mxu0 %v895
        %1046 = vmatprep.subr.mxu0 0.0
        %1047 = vmatpush1.msra.mxu0 %v890
        %1048 = vmatprep.subr.mxu0 0.0
        %1049 = vmatpush2.msra.mxu0 0.0
        %1050 = vmatprep.subr.mxu0 0.0
        %1051 = vmatpush2.msra.mxu0 0.0
        %1052 = vmatprep.subr.mxu0 0.0
        %1053 = vmatpush2.msra.mxu0 0.0
        %1054 = vmatprep.subr.mxu0 0.0
        %1055 = vmatpush2.msra.mxu0 0.0
        %1056 = vmatprep.subr.mxu0 0.0
        %1057 = vmatpush2.msra.mxu0 0.0
        %1058 = vmatprep.subr.mxu0 0.0
        %1059 = vmatpush2.msra.mxu0 0.0
        %1060 = vmatprep.subr.mxu0 0.0
        %1061 = vmatpush2.msra.mxu0 0.0
        %1062 = vmatprep.subr.mxu0 0.0
        %1063 = vmatpush2.msra.mxu0 0.0
        %1064 = vmatprep.subr.mxu0 0.0
        %1065 = vmatpush2.msra.mxu0 0.0
        %1066 = vmatprep.subr.mxu0 0.0
        %1067 = vmatpush2.msra.mxu0 0.0
        %1068 = vmatprep.subr.mxu0 0.0
        %1069 = vmatpush2.msra.mxu0 0.0
        %1070 = vmatprep.subr.mxu0 0.0
        %1071 = vmatpush2.msra.mxu0 0.0
        %1072 = vmatprep.subr.mxu0 0.0
        %1073 = vmatpush2.msra.mxu0 0.0
        %1074 = vmatprep.subr.mxu0 0.0
        %1075 = vmatpush2.msra.mxu0 0.0
        %1076 = vmatprep.subr.mxu0 0.0
        %1077 = vmatpush2.msra.mxu0 0.0
        %1078 = vmatprep.subr.mxu0 0.0
        %1079 = vmatpush2.msra.mxu0 0.0
        %1080 = vmatprep.mubr.f32.mxu0 0.0
        %1081 = vmatmul.mubr.f32.gmra.mxu0 %v1011
        %v1082 = vpop.f32.mrf.mxu0
        %v1083 = vadd.f32 0.0, %v1082
        %v1084 = vpop.f32.mrf.mxu0
        %1085 = vmatprep.mubr.f32.mxu0 0.0
        %1086 = vmatmul.mubr.f32.gmra.mxu0 %v1014
        %v1087 = vpop.f32.mrf.mxu0
        %v1088 = vadd.f32 0.0, %v1087
        %v1089 = vpop.f32.mrf.mxu0
        %1090 = vdwg.mxu0
        %v1091 = vld [vmem:[%s8] sm:$0xff]
        %v1092 = vld [vmem:[%s8 + $0x8] sm:$0xff]
        %s1093 = scalar_lea.vmem %s2, 32
        %v1094 = vld [vmem:[%s1093] sm:$0xff]
        %v1095 = vld [vmem:[%s1093 + $0x8] sm:$0xff]
        %v1096 = vld [vmem:[%s1093 + $0x10] sm:$0xff]
        %v1097 = vld [vmem:[%s1093 + $0x18] sm:$0xff]
        %s1098 = scalar_lea.vmem %s3, 1
        %v1099 = vld [vmem:[%s1098] sm:$0x1]
        %v1101 = vlaneseq
        %v1102 = vshrl.u32 %v1101, 7
        %v1103 = vsub.s32 0, %v1102
        %v1104 = vrot.slane %v1099, %v1103
        %1106 = vmatprep.subr.mxu0 0.0
        %1107 = vmatpush1.msra.mxu0 0.0
        %1108 = vmatprep.subr.mxu0 0.0
        %1109 = vmatpush1.msra.mxu0 0.0
        %1110 = vmatprep.subr.mxu0 0.0
        %1111 = vmatpush1.msra.mxu0 0.0
        %1112 = vmatprep.subr.mxu0 0.0
        %1113 = vmatpush1.msra.mxu0 0.0
        %1114 = vmatprep.subr.mxu0 0.0
        %1115 = vmatpush1.msra.mxu0 0.0
        %1116 = vmatprep.subr.mxu0 0.0
        %1117 = vmatpush1.msra.mxu0 0.0
        %1118 = vmatprep.subr.mxu0 0.0
        %1119 = vmatpush1.msra.mxu0 0.0
        %1120 = vmatprep.subr.mxu0 0.0
        %1121 = vmatpush1.msra.mxu0 0.0
        %1122 = vmatprep.subr.mxu0 0.0
        %1123 = vmatpush1.msra.mxu0 0.0
        %1124 = vmatprep.subr.mxu0 0.0
        %1125 = vmatpush1.msra.mxu0 0.0
        %1126 = vmatprep.subr.mxu0 0.0
        %1127 = vmatpush1.msra.mxu0 0.0
        %1128 = vmatprep.subr.mxu0 0.0
        %1129 = vmatpush1.msra.mxu0 0.0
        %1130 = vmatprep.subr.mxu0 0.0
        %1131 = vmatpush1.msra.mxu0 %v1097
        %1132 = vmatprep.subr.mxu0 0.0
        %1133 = vmatpush1.msra.mxu0 %v1096
        %1134 = vmatprep.subr.mxu0 0.0
        %1135 = vmatpush1.msra.mxu0 %v1095
        %1136 = vmatprep.subr.mxu0 0.0
        %1137 = vmatpush1.msra.mxu0 %v1094
        %1138 = vmatprep.subr.mxu0 0.0
        %1139 = vmatpush2.msra.mxu0 0.0
        %1140 = vmatprep.subr.mxu0 0.0
        %1141 = vmatpush2.msra.mxu0 0.0
        %1142 = vmatprep.subr.mxu0 0.0
        %1143 = vmatpush2.msra.mxu0 0.0
        %1144 = vmatprep.subr.mxu0 0.0
        %1145 = vmatpush2.msra.mxu0 0.0
        %1146 = vmatprep.subr.mxu0 0.0
        %1147 = vmatpush2.msra.mxu0 0.0
        %1148 = vmatprep.subr.mxu0 0.0
        %1149 = vmatpush2.msra.mxu0 0.0
        %1150 = vmatprep.subr.mxu0 0.0
        %1151 = vmatpush2.msra.mxu0 0.0
        %1152 = vmatprep.subr.mxu0 0.0
        %1153 = vmatpush2.msra.mxu0 0.0
        %1154 = vmatprep.subr.mxu0 0.0
        %1155 = vmatpush2.msra.mxu0 0.0
        %1156 = vmatprep.subr.mxu0 0.0
        %1157 = vmatpush2.msra.mxu0 0.0
        %1158 = vmatprep.subr.mxu0 0.0
        %1159 = vmatpush2.msra.mxu0 0.0
        %1160 = vmatprep.subr.mxu0 0.0
        %1161 = vmatpush2.msra.mxu0 0.0
        %1162 = vmatprep.subr.mxu0 0.0
        %1163 = vmatpush2.msra.mxu0 0.0
        %1164 = vmatprep.subr.mxu0 0.0
        %1165 = vmatpush2.msra.mxu0 0.0
        %1166 = vmatprep.subr.mxu0 0.0
        %1167 = vmatpush2.msra.mxu0 0.0
        %1168 = vmatprep.subr.mxu0 0.0
        %1169 = vmatpush2.msra.mxu0 0.0
        %1170 = vmatprep.mubr.f32.mxu0 0.0
        %1171 = vmatmul.mubr.f32.gmra.mxu0 %v646
        %v1172 = vpop.f32.mrf.mxu0
        %v1173 = vadd.f32 %v1104, %v1172
        %v1174 = vpop.f32.mrf.mxu0
        %1175 = vmatprep.mubr.f32.mxu0 0.0
        %1176 = vmatmul.mubr.f32.gmra.mxu0 %v649
        %v1177 = vpop.f32.mrf.mxu0
        %v1178 = vadd.f32 %v1104, %v1177
        %v1179 = vpop.f32.mrf.mxu0
        %1180 = vdwg.mxu0
        %s1181 = scalar_lea.vmem %s4, 32
        %v1182 = vld [vmem:[%s1181] sm:$0xff]
        %v1183 = vld [vmem:[%s1181 + $0x8] sm:$0xff]
        %v1184 = vld [vmem:[%s1181 + $0x10] sm:$0xff]
        %v1185 = vld [vmem:[%s1181 + $0x18] sm:$0xff]
        %s1186 = scalar_lea.vmem %s5, 1
        %v1187 = vld [vmem:[%s1186] sm:$0x1]
        %v1189 = vlaneseq
        %v1190 = vshrl.u32 %v1189, 7
        %v1191 = vsub.s32 0, %v1190
        %v1192 = vrot.slane %v1187, %v1191
        %1194 = vmatprep.subr.mxu0 0.0
        %1195 = vmatpush1.msra.mxu0 0.0
        %1196 = vmatprep.subr.mxu0 0.0
        %1197 = vmatpush1.msra.mxu0 0.0
        %1198 = vmatprep.subr.mxu0 0.0
        %1199 = vmatpush1.msra.mxu0 0.0
        %1200 = vmatprep.subr.mxu0 0.0
        %1201 = vmatpush1.msra.mxu0 0.0
        %1202 = vmatprep.subr.mxu0 0.0
        %1203 = vmatpush1.msra.mxu0 0.0
        %1204 = vmatprep.subr.mxu0 0.0
        %1205 = vmatpush1.msra.mxu0 0.0
        %1206 = vmatprep.subr.mxu0 0.0
        %1207 = vmatpush1.msra.mxu0 0.0
        %1208 = vmatprep.subr.mxu0 0.0
        %1209 = vmatpush1.msra.mxu0 0.0
        %1210 = vmatprep.subr.mxu0 0.0
        %1211 = vmatpush1.msra.mxu0 0.0
        %1212 = vmatprep.subr.mxu0 0.0
        %1213 = vmatpush1.msra.mxu0 0.0
        %1214 = vmatprep.subr.mxu0 0.0
        %1215 = vmatpush1.msra.mxu0 0.0
        %1216 = vmatprep.subr.mxu0 0.0
        %1217 = vmatpush1.msra.mxu0 0.0
        %1218 = vmatprep.subr.mxu0 0.0
        %1219 = vmatpush1.msra.mxu0 %v1185
        %1220 = vmatprep.subr.mxu0 0.0
        %1221 = vmatpush1.msra.mxu0 %v1184
        %1222 = vmatprep.subr.mxu0 0.0
        %1223 = vmatpush1.msra.mxu0 %v1183
        %1224 = vmatprep.subr.mxu0 0.0
        %1225 = vmatpush1.msra.mxu0 %v1182
        %1226 = vmatprep.subr.mxu0 0.0
        %1227 = vmatpush2.msra.mxu0 0.0
        %1228 = vmatprep.subr.mxu0 0.0
        %1229 = vmatpush2.msra.mxu0 0.0
        %1230 = vmatprep.subr.mxu0 0.0
        %1231 = vmatpush2.msra.mxu0 0.0
        %1232 = vmatprep.subr.mxu0 0.0
        %1233 = vmatpush2.msra.mxu0 0.0
        %1234 = vmatprep.subr.mxu0 0.0
        %1235 = vmatpush2.msra.mxu0 0.0
        %1236 = vmatprep.subr.mxu0 0.0
        %1237 = vmatpush2.msra.mxu0 0.0
        %1238 = vmatprep.subr.mxu0 0.0
        %1239 = vmatpush2.msra.mxu0 0.0
        %1240 = vmatprep.subr.mxu0 0.0
        %1241 = vmatpush2.msra.mxu0 0.0
        %1242 = vmatprep.subr.mxu0 0.0
        %1243 = vmatpush2.msra.mxu0 0.0
        %1244 = vmatprep.subr.mxu0 0.0
        %1245 = vmatpush2.msra.mxu0 0.0
        %1246 = vmatprep.subr.mxu0 0.0
        %1247 = vmatpush2.msra.mxu0 0.0
        %1248 = vmatprep.subr.mxu0 0.0
        %1249 = vmatpush2.msra.mxu0 0.0
        %1250 = vmatprep.subr.mxu0 0.0
        %1251 = vmatpush2.msra.mxu0 0.0
        %1252 = vmatprep.subr.mxu0 0.0
        %1253 = vmatpush2.msra.mxu0 0.0
        %1254 = vmatprep.subr.mxu0 0.0
        %1255 = vmatpush2.msra.mxu0 0.0
        %1256 = vmatprep.subr.mxu0 0.0
        %1257 = vmatpush2.msra.mxu0 0.0
        %1258 = vmatprep.mubr.f32.mxu0 0.0
        %1259 = vmatmul.mubr.f32.gmra.mxu0 %v646
        %v1260 = vpop.f32.mrf.mxu0
        %v1261 = vadd.f32 %v1192, %v1260
        %v1262 = vpop.f32.mrf.mxu0
        %1263 = vmatprep.mubr.f32.mxu0 0.0
        %1264 = vmatmul.mubr.f32.gmra.mxu0 %v649
        %v1265 = vpop.f32.mrf.mxu0
        %v1266 = vadd.f32 %v1192, %v1265
        %v1267 = vpop.f32.mrf.mxu0
        %1268 = vdwg.mxu0
        %s1269 = scalar_lea.vmem %s6, 32
        %v1270 = vld [vmem:[%s1269] sm:$0xff]
        %v1271 = vld [vmem:[%s1269 + $0x8] sm:$0xff]
        %v1272 = vld [vmem:[%s1269 + $0x10] sm:$0xff]
        %v1273 = vld [vmem:[%s1269 + $0x18] sm:$0xff]
        %s1274 = scalar_lea.vmem %s7, 1
        %v1275 = vld [vmem:[%s1274] sm:$0x1]
        %v1277 = vlaneseq
        %v1278 = vshrl.u32 %v1277, 7
        %v1279 = vsub.s32 0, %v1278
        %v1280 = vrot.slane %v1275, %v1279
        %1282 = vmatprep.subr.mxu0 0.0
        %1283 = vmatpush1.msra.mxu0 0.0
        %1284 = vmatprep.subr.mxu0 0.0
        %1285 = vmatpush1.msra.mxu0 0.0
        %1286 = vmatprep.subr.mxu0 0.0
        %1287 = vmatpush1.msra.mxu0 0.0
        %1288 = vmatprep.subr.mxu0 0.0
        %1289 = vmatpush1.msra.mxu0 0.0
        %1290 = vmatprep.subr.mxu0 0.0
        %1291 = vmatpush1.msra.mxu0 0.0
        %1292 = vmatprep.subr.mxu0 0.0
        %1293 = vmatpush1.msra.mxu0 0.0
        %1294 = vmatprep.subr.mxu0 0.0
        %1295 = vmatpush1.msra.mxu0 0.0
        %1296 = vmatprep.subr.mxu0 0.0
        %1297 = vmatpush1.msra.mxu0 0.0
        %1298 = vmatprep.subr.mxu0 0.0
        %1299 = vmatpush1.msra.mxu0 0.0
        %1300 = vmatprep.subr.mxu0 0.0
        %1301 = vmatpush1.msra.mxu0 0.0
        %1302 = vmatprep.subr.mxu0 0.0
        %1303 = vmatpush1.msra.mxu0 0.0
        %1304 = vmatprep.subr.mxu0 0.0
        %1305 = vmatpush1.msra.mxu0 0.0
        %1306 = vmatprep.subr.mxu0 0.0
        %1307 = vmatpush1.msra.mxu0 %v1273
        %1308 = vmatprep.subr.mxu0 0.0
        %1309 = vmatpush1.msra.mxu0 %v1272
        %1310 = vmatprep.subr.mxu0 0.0
        %1311 = vmatpush1.msra.mxu0 %v1271
        %1312 = vmatprep.subr.mxu0 0.0
        %1313 = vmatpush1.msra.mxu0 %v1270
        %1314 = vmatprep.subr.mxu0 0.0
        %1315 = vmatpush2.msra.mxu0 0.0
        %1316 = vmatprep.subr.mxu0 0.0
        %1317 = vmatpush2.msra.mxu0 0.0
        %1318 = vmatprep.subr.mxu0 0.0
        %1319 = vmatpush2.msra.mxu0 0.0
        %1320 = vmatprep.subr.mxu0 0.0
        %1321 = vmatpush2.msra.mxu0 0.0
        %1322 = vmatprep.subr.mxu0 0.0
        %1323 = vmatpush2.msra.mxu0 0.0
        %1324 = vmatprep.subr.mxu0 0.0
        %1325 = vmatpush2.msra.mxu0 0.0
        %1326 = vmatprep.subr.mxu0 0.0
        %1327 = vmatpush2.msra.mxu0 0.0
        %1328 = vmatprep.subr.mxu0 0.0
        %1329 = vmatpush2.msra.mxu0 0.0
        %1330 = vmatprep.subr.mxu0 0.0
        %1331 = vmatpush2.msra.mxu0 0.0
        %1332 = vmatprep.subr.mxu0 0.0
        %1333 = vmatpush2.msra.mxu0 0.0
        %1334 = vmatprep.subr.mxu0 0.0
        %1335 = vmatpush2.msra.mxu0 0.0
        %1336 = vmatprep.subr.mxu0 0.0
        %1337 = vmatpush2.msra.mxu0 0.0
        %1338 = vmatprep.subr.mxu0 0.0
        %1339 = vmatpush2.msra.mxu0 0.0
        %1340 = vmatprep.subr.mxu0 0.0
        %1341 = vmatpush2.msra.mxu0 0.0
        %1342 = vmatprep.subr.mxu0 0.0
        %1343 = vmatpush2.msra.mxu0 0.0
        %1344 = vmatprep.subr.mxu0 0.0
        %1345 = vmatpush2.msra.mxu0 0.0
        %1346 = vmatprep.mubr.f32.mxu0 0.0
        %1347 = vmatmul.mubr.f32.gmra.mxu0 %v646
        %v1348 = vpop.f32.mrf.mxu0
        %v1349 = vadd.f32 %v1280, %v1348
        %v1350 = vpop.f32.mrf.mxu0
        %1351 = vmatprep.mubr.f32.mxu0 0.0
        %1352 = vmatmul.mubr.f32.gmra.mxu0 %v649
        %v1353 = vpop.f32.mrf.mxu0
        %v1354 = vadd.f32 %v1280, %v1353
        %v1355 = vpop.f32.mrf.mxu0
        %1356 = vdwg.mxu0
        %v1358 = vsel %vm898, %v1173, 0
        %v1361 = vsel %vm898, %v1178, 0
        %v1364 = vsel %vm898, %v1261, 0
        %v1367 = vsel %vm898, %v1266, 0
        %1369 = vmatprep.subr.mxu0 0.0
        %1370 = vmatpush1.xpose.msra.mxu0 0.0
        %1371 = vmatprep.subr.mxu0 0.0
        %1372 = vmatpush1.xpose.msra.mxu0 0.0
        %1373 = vmatprep.subr.mxu0 0.0
        %1374 = vmatpush1.xpose.msra.mxu0 0.0
        %1375 = vmatprep.subr.mxu0 0.0
        %1376 = vmatpush1.xpose.msra.mxu0 0.0
        %1377 = vmatprep.subr.mxu0 0.0
        %1378 = vmatpush1.xpose.msra.mxu0 0.0
        %1379 = vmatprep.subr.mxu0 0.0
        %1380 = vmatpush1.xpose.msra.mxu0 0.0
        %1381 = vmatprep.subr.mxu0 0.0
        %1382 = vmatpush1.xpose.msra.mxu0 0.0
        %1383 = vmatprep.subr.mxu0 0.0
        %1384 = vmatpush1.xpose.msra.mxu0 0.0
        %1385 = vmatprep.subr.mxu0 0.0
        %1386 = vmatpush1.xpose.msra.mxu0 0.0
        %1387 = vmatprep.subr.mxu0 0.0
        %1388 = vmatpush1.xpose.msra.mxu0 0.0
        %1389 = vmatprep.subr.mxu0 0.0
        %1390 = vmatpush1.xpose.msra.mxu0 0.0
        %1391 = vmatprep.subr.mxu0 0.0
        %1392 = vmatpush1.xpose.msra.mxu0 0.0
        %1393 = vmatprep.subr.mxu0 0.0
        %1394 = vmatpush1.xpose.msra.mxu0 0.0
        %1395 = vmatprep.subr.mxu0 0.0
        %1396 = vmatpush1.xpose.msra.mxu0 0.0
        %1397 = vmatprep.subr.mxu0 0.0
        %1398 = vmatpush1.xpose.msra.mxu0 %v1367
        %1399 = vmatprep.subr.mxu0 0.0
        %1400 = vmatpush1.xpose.msra.mxu0 %v1364
        %1401 = vmatprep.subr.mxu0 0.0
        %1402 = vmatpush2.xpose.msra.mxu0 0.0
        %1403 = vmatprep.subr.mxu0 0.0
        %1404 = vmatpush2.xpose.msra.mxu0 0.0
        %1405 = vmatprep.subr.mxu0 0.0
        %1406 = vmatpush2.xpose.msra.mxu0 0.0
        %1407 = vmatprep.subr.mxu0 0.0
        %1408 = vmatpush2.xpose.msra.mxu0 0.0
        %1409 = vmatprep.subr.mxu0 0.0
        %1410 = vmatpush2.xpose.msra.mxu0 0.0
        %1411 = vmatprep.subr.mxu0 0.0
        %1412 = vmatpush2.xpose.msra.mxu0 0.0
        %1413 = vmatprep.subr.mxu0 0.0
        %1414 = vmatpush2.xpose.msra.mxu0 0.0
        %1415 = vmatprep.subr.mxu0 0.0
        %1416 = vmatpush2.xpose.msra.mxu0 0.0
        %1417 = vmatprep.subr.mxu0 0.0
        %1418 = vmatpush2.xpose.msra.mxu0 0.0
        %1419 = vmatprep.subr.mxu0 0.0
        %1420 = vmatpush2.xpose.msra.mxu0 0.0
        %1421 = vmatprep.subr.mxu0 0.0
        %1422 = vmatpush2.xpose.msra.mxu0 0.0
        %1423 = vmatprep.subr.mxu0 0.0
        %1424 = vmatpush2.xpose.msra.mxu0 0.0
        %1425 = vmatprep.subr.mxu0 0.0
        %1426 = vmatpush2.xpose.msra.mxu0 0.0
        %1427 = vmatprep.subr.mxu0 0.0
        %1428 = vmatpush2.xpose.msra.mxu0 0.0
        %1429 = vmatprep.subr.mxu0 0.0
        %1430 = vmatpush2.xpose.msra.mxu0 0.0
        %1431 = vmatprep.subr.mxu0 0.0
        %1432 = vmatpush2.xpose.msra.mxu0 0.0
        %1433 = vmatprep.mubr.f32.mxu0 0.0
        %1434 = vmatmul.mubr.f32.gmra.mxu0 %v1358
        %v1435 = vpop.f32.mrf.mxu0
        %v1436 = vadd.f32 0.0, %v1435
        %v1437 = vpop.f32.mrf.mxu0
        %1438 = vmatprep.mubr.f32.mxu0 0.0
        %1439 = vmatmul.mubr.f32.gmra.mxu0 %v1361
        %v1440 = vpop.f32.mrf.mxu0
        %v1441 = vadd.f32 0.0, %v1440
        %v1442 = vpop.f32.mrf.mxu0
        %1443 = vdwg.mxu0
        %v1444 = vmul.f32 %v1436, 0.25
        %v1445 = vmul.f32 %v1441, 0.25
        %v1446 = vsel %vm898, %v1444, -inf
        %1447 = vmax.xlane.f32.xlu0 %v1446
        %v1448 = vpop.xlane.xlu0 %1447
        %v1449 = vsel %vm898, %v1445, -inf
        %1450 = vmax.xlane.f32.xlu0 %v1449
        %v1451 = vpop.xlane.xlu0 %1450
        %v1452 = vsub.f32 %v1444, %v1448
        %v1453 = vsub.f32 %v1445, %v1451
        %v1454 = vmul.f32 %v1452, 1.442695
        %v1455 = vpow.pop %v1454
        %v1456 = vmul.f32 %v1453, 1.442695
        %v1457 = vpow.pop %v1456
        %v1458 = vsel %vm898, %v1455, 0.0
        %1459 = vadd.xlane.f32.xlu0 %v1458
        %v1460 = vpop.xlane.xlu0 %1459
        %v1461 = vsel %vm898, %v1457, 0.0
        %1462 = vadd.xlane.f32.xlu0 %v1461
        %v1463 = vpop.xlane.xlu0 %1462
        %v1464 = vrcp.pop %v1460
        %v1465 = vmul.f32 %v1455, %v1464
        %v1466 = vrcp.pop %v1463
        %v1467 = vmul.f32 %v1457, %v1466
        %v1469 = vsel %vm898, %v1465, 0
        %v1472 = vsel %vm898, %v1467, 0
        %1474 = vmatprep.subr.mxu0 0.0
        %1475 = vmatpush1.msra.mxu0 0.0
        %1476 = vmatprep.subr.mxu0 0.0
        %1477 = vmatpush1.msra.mxu0 0.0
        %1478 = vmatprep.subr.mxu0 0.0
        %1479 = vmatpush1.msra.mxu0 0.0
        %1480 = vmatprep.subr.mxu0 0.0
        %1481 = vmatpush1.msra.mxu0 0.0
        %1482 = vmatprep.subr.mxu0 0.0
        %1483 = vmatpush1.msra.mxu0 0.0
        %1484 = vmatprep.subr.mxu0 0.0
        %1485 = vmatpush1.msra.mxu0 0.0
        %1486 = vmatprep.subr.mxu0 0.0
        %1487 = vmatpush1.msra.mxu0 0.0
        %1488 = vmatprep.subr.mxu0 0.0
        %1489 = vmatpush1.msra.mxu0 0.0
        %1490 = vmatprep.subr.mxu0 0.0
        %1491 = vmatpush1.msra.mxu0 0.0
        %1492 = vmatprep.subr.mxu0 0.0
        %1493 = vmatpush1.msra.mxu0 0.0
        %1494 = vmatprep.subr.mxu0 0.0
        %1495 = vmatpush1.msra.mxu0 0.0
        %1496 = vmatprep.subr.mxu0 0.0
        %1497 = vmatpush1.msra.mxu0 0.0
        %1498 = vmatprep.subr.mxu0 0.0
        %1499 = vmatpush1.msra.mxu0 0.0
        %1500 = vmatprep.subr.mxu0 0.0
        %1501 = vmatpush1.msra.mxu0 0.0
        %1502 = vmatprep.subr.mxu0 0.0
        %1503 = vmatpush1.msra.mxu0 %v1354
        %1504 = vmatprep.subr.mxu0 0.0
        %1505 = vmatpush1.msra.mxu0 %v1349
        %1506 = vmatprep.subr.mxu0 0.0
        %1507 = vmatpush2.msra.mxu0 0.0
        %1508 = vmatprep.subr.mxu0 0.0
        %1509 = vmatpush2.msra.mxu0 0.0
        %1510 = vmatprep.subr.mxu0 0.0
        %1511 = vmatpush2.msra.mxu0 0.0
        %1512 = vmatprep.subr.mxu0 0.0
        %1513 = vmatpush2.msra.mxu0 0.0
        %1514 = vmatprep.subr.mxu0 0.0
        %1515 = vmatpush2.msra.mxu0 0.0
        %1516 = vmatprep.subr.mxu0 0.0
        %1517 = vmatpush2.msra.mxu0 0.0
        %1518 = vmatprep.subr.mxu0 0.0
        %1519 = vmatpush2.msra.mxu0 0.0
        %1520 = vmatprep.subr.mxu0 0.0
        %1521 = vmatpush2.msra.mxu0 0.0
        %1522 = vmatprep.subr.mxu0 0.0
        %1523 = vmatpush2.msra.mxu0 0.0
        %1524 = vmatprep.subr.mxu0 0.0
        %1525 = vmatpush2.msra.mxu0 0.0
        %1526 = vmatprep.subr.mxu0 0.0
        %1527 = vmatpush2.msra.mxu0 0.0
        %1528 = vmatprep.subr.mxu0 0.0
        %1529 = vmatpush2.msra.mxu0 0.0
        %1530 = vmatprep.subr.mxu0 0.0
        %1531 = vmatpush2.msra.mxu0 0.0
        %1532 = vmatprep.subr.mxu0 0.0
        %1533 = vmatpush2.msra.mxu0 0.0
        %1534 = vmatprep.subr.mxu0 0.0
        %1535 = vmatpush2.msra.mxu0 0.0
        %1536 = vmatprep.subr.mxu0 0.0
        %1537 = vmatpush2.msra.mxu0 0.0
        %1538 = vmatprep.mubr.f32.mxu0 0.0
        %1539 = vmatmul.mubr.f32.gmra.mxu0 %v1469
        %v1540 = vpop.f32.mrf.mxu0
        %v1541 = vadd.f32 0.0, %v1540
        %v1542 = vpop.f32.mrf.mxu0
        %1543 = vmatprep.mubr.f32.mxu0 0.0
        %1544 = vmatmul.mubr.f32.gmra.mxu0 %v1472
        %v1545 = vpop.f32.mrf.mxu0
        %v1546 = vadd.f32 0.0, %v1545
        %v1547 = vpop.f32.mrf.mxu0
        %1548 = vdwg.mxu0
        %s1549 = scalar_lea.vmem %s8, 16
        %v1550 = vld [vmem:[%s1549] sm:$0xff]
        %v1551 = vld [vmem:[%s1549 + $0x8] sm:$0xff]
        %v1553 = vsel %vm898, %v1541, 0
        %v1556 = vsel %vm898, %v1546, 0
        %1558 = vmatprep.subr.mxu0 0.0
        %1559 = vmatpush1.msra.mxu0 0.0
        %1560 = vmatprep.subr.mxu0 0.0
        %1561 = vmatpush1.msra.mxu0 0.0
        %1562 = vmatprep.subr.mxu0 0.0
        %1563 = vmatpush1.msra.mxu0 0.0
        %1564 = vmatprep.subr.mxu0 0.0
        %1565 = vmatpush1.msra.mxu0 0.0
        %1566 = vmatprep.subr.mxu0 0.0
        %1567 = vmatpush1.msra.mxu0 0.0
        %1568 = vmatprep.subr.mxu0 0.0
        %1569 = vmatpush1.msra.mxu0 0.0
        %1570 = vmatprep.subr.mxu0 0.0
        %1571 = vmatpush1.msra.mxu0 0.0
        %1572 = vmatprep.subr.mxu0 0.0
        %1573 = vmatpush1.msra.mxu0 0.0
        %1574 = vmatprep.subr.mxu0 0.0
        %1575 = vmatpush1.msra.mxu0 0.0
        %1576 = vmatprep.subr.mxu0 0.0
        %1577 = vmatpush1.msra.mxu0 0.0
        %1578 = vmatprep.subr.mxu0 0.0
        %1579 = vmatpush1.msra.mxu0 0.0
        %1580 = vmatprep.subr.mxu0 0.0
        %1581 = vmatpush1.msra.mxu0 0.0
        %1582 = vmatprep.subr.mxu0 0.0
        %1583 = vmatpush1.msra.mxu0 0.0
        %1584 = vmatprep.subr.mxu0 0.0
        %1585 = vmatpush1.msra.mxu0 0.0
        %1586 = vmatprep.subr.mxu0 0.0
        %1587 = vmatpush1.msra.mxu0 %v1551
        %1588 = vmatprep.subr.mxu0 0.0
        %1589 = vmatpush1.msra.mxu0 %v1550
        %1590 = vmatprep.subr.mxu0 0.0
        %1591 = vmatpush2.msra.mxu0 0.0
        %1592 = vmatprep.subr.mxu0 0.0
        %1593 = vmatpush2.msra.mxu0 0.0
        %1594 = vmatprep.subr.mxu0 0.0
        %1595 = vmatpush2.msra.mxu0 0.0
        %1596 = vmatprep.subr.mxu0 0.0
        %1597 = vmatpush2.msra.mxu0 0.0
        %1598 = vmatprep.subr.mxu0 0.0
        %1599 = vmatpush2.msra.mxu0 0.0
        %1600 = vmatprep.subr.mxu0 0.0
        %1601 = vmatpush2.msra.mxu0 0.0
        %1602 = vmatprep.subr.mxu0 0.0
        %1603 = vmatpush2.msra.mxu0 0.0
        %1604 = vmatprep.subr.mxu0 0.0
        %1605 = vmatpush2.msra.mxu0 0.0
        %1606 = vmatprep.subr.mxu0 0.0
        %1607 = vmatpush2.msra.mxu0 0.0
        %1608 = vmatprep.subr.mxu0 0.0
        %1609 = vmatpush2.msra.mxu0 0.0
        %1610 = vmatprep.subr.mxu0 0.0
        %1611 = vmatpush2.msra.mxu0 0.0
        %1612 = vmatprep.subr.mxu0 0.0
        %1613 = vmatpush2.msra.mxu0 0.0
        %1614 = vmatprep.subr.mxu0 0.0
        %1615 = vmatpush2.msra.mxu0 0.0
        %1616 = vmatprep.subr.mxu0 0.0
        %1617 = vmatpush2.msra.mxu0 0.0
        %1618 = vmatprep.subr.mxu0 0.0
        %1619 = vmatpush2.msra.mxu0 0.0
        %1620 = vmatprep.subr.mxu0 0.0
        %1621 = vmatpush2.msra.mxu0 0.0
        %1622 = vmatprep.mubr.f32.mxu0 0.0
        %1623 = vmatmul.mubr.f32.gmra.mxu0 %v1553
        %v1624 = vpop.f32.mrf.mxu0
        %v1625 = vadd.f32 0.0, %v1624
        %v1626 = vpop.f32.mrf.mxu0
        %1627 = vmatprep.mubr.f32.mxu0 0.0
        %1628 = vmatmul.mubr.f32.gmra.mxu0 %v1556
        %v1629 = vpop.f32.mrf.mxu0
        %v1630 = vadd.f32 0.0, %v1629
        %v1631 = vpop.f32.mrf.mxu0
        %1632 = vdwg.mxu0
        %v1634 = vsel %vm898, %v1083, 0
        %v1637 = vsel %vm898, %v1088, 0
        %1639 = vmatprep.subr.mxu0 0.0
        %1640 = vmatpush1.msra.mxu0 0.0
        %1641 = vmatprep.subr.mxu0 0.0
        %1642 = vmatpush1.msra.mxu0 0.0
        %1643 = vmatprep.subr.mxu0 0.0
        %1644 = vmatpush1.msra.mxu0 0.0
        %1645 = vmatprep.subr.mxu0 0.0
        %1646 = vmatpush1.msra.mxu0 0.0
        %1647 = vmatprep.subr.mxu0 0.0
        %1648 = vmatpush1.msra.mxu0 0.0
        %1649 = vmatprep.subr.mxu0 0.0
        %1650 = vmatpush1.msra.mxu0 0.0
        %1651 = vmatprep.subr.mxu0 0.0
        %1652 = vmatpush1.msra.mxu0 0.0
        %1653 = vmatprep.subr.mxu0 0.0
        %1654 = vmatpush1.msra.mxu0 0.0
        %1655 = vmatprep.subr.mxu0 0.0
        %1656 = vmatpush1.msra.mxu0 0.0
        %1657 = vmatprep.subr.mxu0 0.0
        %1658 = vmatpush1.msra.mxu0 0.0
        %1659 = vmatprep.subr.mxu0 0.0
        %1660 = vmatpush1.msra.mxu0 0.0
        %1661 = vmatprep.subr.mxu0 0.0
        %1662 = vmatpush1.msra.mxu0 0.0
        %1663 = vmatprep.subr.mxu0 0.0
        %1664 = vmatpush1.msra.mxu0 0.0
        %1665 = vmatprep.subr.mxu0 0.0
        %1666 = vmatpush1.msra.mxu0 0.0
        %1667 = vmatprep.subr.mxu0 0.0
        %1668 = vmatpush1.msra.mxu0 %v1092
        %1669 = vmatprep.subr.mxu0 0.0
        %1670 = vmatpush1.msra.mxu0 %v1091
        %1671 = vmatprep.subr.mxu0 0.0
        %1672 = vmatpush2.msra.mxu0 0.0
        %1673 = vmatprep.subr.mxu0 0.0
        %1674 = vmatpush2.msra.mxu0 0.0
        %1675 = vmatprep.subr.mxu0 0.0
        %1676 = vmatpush2.msra.mxu0 0.0
        %1677 = vmatprep.subr.mxu0 0.0
        %1678 = vmatpush2.msra.mxu0 0.0
        %1679 = vmatprep.subr.mxu0 0.0
        %1680 = vmatpush2.msra.mxu0 0.0
        %1681 = vmatprep.subr.mxu0 0.0
        %1682 = vmatpush2.msra.mxu0 0.0
        %1683 = vmatprep.subr.mxu0 0.0
        %1684 = vmatpush2.msra.mxu0 0.0
        %1685 = vmatprep.subr.mxu0 0.0
        %1686 = vmatpush2.msra.mxu0 0.0
        %1687 = vmatprep.subr.mxu0 0.0
        %1688 = vmatpush2.msra.mxu0 0.0
        %1689 = vmatprep.subr.mxu0 0.0
        %1690 = vmatpush2.msra.mxu0 0.0
        %1691 = vmatprep.subr.mxu0 0.0
        %1692 = vmatpush2.msra.mxu0 0.0
        %1693 = vmatprep.subr.mxu0 0.0
        %1694 = vmatpush2.msra.mxu0 0.0
        %1695 = vmatprep.subr.mxu0 0.0
        %1696 = vmatpush2.msra.mxu0 0.0
        %1697 = vmatprep.subr.mxu0 0.0
        %1698 = vmatpush2.msra.mxu0 0.0
        %1699 = vmatprep.subr.mxu0 0.0
        %1700 = vmatpush2.msra.mxu0 0.0
        %1701 = vmatprep.subr.mxu0 0.0
        %1702 = vmatpush2.msra.mxu0 0.0
        %1703 = vmatprep.mubr.f32.mxu0 0.0
        %1704 = vmatmul.mubr.f32.gmra.mxu0 %v1634
        %v1705 = vpop.f32.mrf.mxu0
        %v1706 = vadd.f32 %v1625, %v1705
        %v1707 = vpop.f32.mrf.mxu0
        %1708 = vmatprep.mubr.f32.mxu0 0.0
        %1709 = vmatmul.mubr.f32.gmra.mxu0 %v1637
        %v1710 = vpop.f32.mrf.mxu0
        %v1711 = vadd.f32 %v1630, %v1710
        %v1712 = vpop.f32.mrf.mxu0
        %1713 = vdwg.mxu0
        %v1714 = vld [vmem:[%s9] sm:$0x1]
        %v1716 = vlaneseq
        %v1717 = vshrl.u32 %v1716, 7
        %v1718 = vsub.s32 0, %v1717
        %v1719 = vrot.slane %v1714, %v1718
        %v1721 = vadd.f32 %v1706, %v1719
        %v1722 = vadd.f32 %v1711, %v1719
        %v1723 = vadd.f32 %v631, %v1721
        %v1724 = vadd.f32 %v632, %v1722
        %v1725 = vsel %vm644, %v1723, 0.0
        %1726 = vadd.xlane.f32.xlu0 %v1725
        %v1727 = vpop.xlane.xlu0 %1726
        %v1728 = vsel %vm644, %v1724, 0.0
        %1729 = vadd.xlane.f32.xlu0 %v1728
        %v1730 = vpop.xlane.xlu0 %1729
        %v1731 = vrcp.pop 32.0
        %v1732 = vmul.f32 %v1727, %v1731
        %v1733 = vmul.f32 %v1730, %v1731
        %v1734 = vsub.f32 %v1723, %v1732
        %v1735 = vsub.f32 %v1724, %v1733
        %v1736 = vmul.f32 %v1734, %v1734
        %v1737 = vmul.f32 %v1735, %v1735
        %v1738 = vsel %vm644, %v1736, 0.0
        %1739 = vadd.xlane.f32.xlu0 %v1738
        %v1740 = vpop.xlane.xlu0 %1739
        %v1741 = vsel %vm644, %v1737, 0.0
        %1742 = vadd.xlane.f32.xlu0 %v1741
        %v1743 = vpop.xlane.xlu0 %1742
        %v1744 = vmul.f32 %v1740, %v1731
        %v1745 = vmul.f32 %v1743, %v1731
        %v1746 = vadd.f32 %v1744, 1e-05
        %v1747 = vadd.f32 %v1745, 1e-05
        %v1748 = vrsqrt.pop %v1746
        %v1749 = vrsqrt.pop %v1747
        %v1750 = vmul.f32 %v1734, %v1748
        %v1751 = vmul.f32 %v1735, %v1749
        %v1752 = vld [vmem:[%s10] sm:$0x1]
        %v1754 = vlaneseq
        %v1755 = vshrl.u32 %v1754, 7
        %v1756 = vsub.s32 0, %v1755
        %v1757 = vrot.slane %v1752, %v1756
        %v1759 = vmul.f32 %v1750, %v1757
        %v1760 = vmul.f32 %v1751, %v1757
        %v1761 = vld [vmem:[%s11] sm:$0x1]
        %v1763 = vlaneseq
        %v1764 = vshrl.u32 %v1763, 7
        %v1765 = vsub.s32 0, %v1764
        %v1766 = vrot.slane %v1761, %v1765
        %v1768 = vadd.f32 %v1759, %v1766
        %v1769 = vadd.f32 %v1760, %v1766
        %v1770 = vld [vmem:[%s12] sm:$0xff]
        %v1771 = vld [vmem:[%s12 + $0x8] sm:$0xff]
        %v1772 = vld [vmem:[%s12 + $0x10] sm:$0xff]
        %v1773 = vld [vmem:[%s12 + $0x18] sm:$0xff]
        %v1774 = vld [vmem:[%s13] sm:$0x1]
        %v1776 = vlaneseq
        %v1777 = vshrl.u32 %v1776, 7
        %v1778 = vsub.s32 0, %v1777
        %v1779 = vrot.slane %v1774, %v1778
        %v1782 = vsel %vm644, %v1768, 0
        %v1785 = vsel %vm644, %v1769, 0
        %1787 = vmatprep.subr.mxu0 0.0
        %1788 = vmatpush1.msra.mxu0 0.0
        %1789 = vmatprep.subr.mxu0 0.0
        %1790 = vmatpush1.msra.mxu0 0.0
        %1791 = vmatprep.subr.mxu0 0.0
        %1792 = vmatpush1.msra.mxu0 0.0
        %1793 = vmatprep.subr.mxu0 0.0
        %1794 = vmatpush1.msra.mxu0 0.0
        %1795 = vmatprep.subr.mxu0 0.0
        %1796 = vmatpush1.msra.mxu0 0.0
        %1797 = vmatprep.subr.mxu0 0.0
        %1798 = vmatpush1.msra.mxu0 0.0
        %1799 = vmatprep.subr.mxu0 0.0
        %1800 = vmatpush1.msra.mxu0 0.0
        %1801 = vmatprep.subr.mxu0 0.0
        %1802 = vmatpush1.msra.mxu0 0.0
        %1803 = vmatprep.subr.mxu0 0.0
        %1804 = vmatpush1.msra.mxu0 0.0
        %1805 = vmatprep.subr.mxu0 0.0
        %1806 = vmatpush1.msra.mxu0 0.0
        %1807 = vmatprep.subr.mxu0 0.0
        %1808 = vmatpush1.msra.mxu0 0.0
        %1809 = vmatprep.subr.mxu0 0.0
        %1810 = vmatpush1.msra.mxu0 0.0
        %1811 = vmatprep.subr.mxu0 0.0
        %1812 = vmatpush1.msra.mxu0 %v1773
        %1813 = vmatprep.subr.mxu0 0.0
        %1814 = vmatpush1.msra.mxu0 %v1772
        %1815 = vmatprep.subr.mxu0 0.0
        %1816 = vmatpush1.msra.mxu0 %v1771
        %1817 = vmatprep.subr.mxu0 0.0
        %1818 = vmatpush1.msra.mxu0 %v1770
        %1819 = vmatprep.subr.mxu0 0.0
        %1820 = vmatpush2.msra.mxu0 0.0
        %1821 = vmatprep.subr.mxu0 0.0
        %1822 = vmatpush2.msra.mxu0 0.0
        %1823 = vmatprep.subr.mxu0 0.0
        %1824 = vmatpush2.msra.mxu0 0.0
        %1825 = vmatprep.subr.mxu0 0.0
        %1826 = vmatpush2.msra.mxu0 0.0
        %1827 = vmatprep.subr.mxu0 0.0
        %1828 = vmatpush2.msra.mxu0 0.0
        %1829 = vmatprep.subr.mxu0 0.0
        %1830 = vmatpush2.msra.mxu0 0.0
        %1831 = vmatprep.subr.mxu0 0.0
        %1832 = vmatpush2.msra.mxu0 0.0
        %1833 = vmatprep.subr.mxu0 0.0
        %1834 = vmatpush2.msra.mxu0 0.0
        %1835 = vmatprep.subr.mxu0 0.0
        %1836 = vmatpush2.msra.mxu0 0.0
        %1837 = vmatprep.subr.mxu0 0.0
        %1838 = vmatpush2.msra.mxu0 0.0
        %1839 = vmatprep.subr.mxu0 0.0
        %1840 = vmatpush2.msra.mxu0 0.0
        %1841 = vmatprep.subr.mxu0 0.0
        %1842 = vmatpush2.msra.mxu0 0.0
        %1843 = vmatprep.subr.mxu0 0.0
        %1844 = vmatpush2.msra.mxu0 0.0
        %1845 = vmatprep.subr.mxu0 0.0
        %1846 = vmatpush2.msra.mxu0 0.0
        %1847 = vmatprep.subr.mxu0 0.0
        %1848 = vmatpush2.msra.mxu0 0.0
        %1849 = vmatprep.subr.mxu0 0.0
        %1850 = vmatpush2.msra.mxu0 0.0
        %1851 = vmatprep.mubr.f32.mxu0 0.0
        %1852 = vmatmul.mubr.f32.gmra.mxu0 %v1782
        %v1853 = vpop.f32.mrf.mxu0
        %v1854 = vadd.f32 %v1779, %v1853
        %v1855 = vpop.f32.mrf.mxu0
        %1856 = vmatprep.mubr.f32.mxu0 0.0
        %1857 = vmatmul.mubr.f32.gmra.mxu0 %v1785
        %v1858 = vpop.f32.mrf.mxu0
        %v1859 = vadd.f32 %v1779, %v1858
        %v1860 = vpop.f32.mrf.mxu0
        %1861 = vdwg.mxu0
        %v1862 = vmax.f32 %v1854, 0.0
        %v1863 = vmax.f32 %v1859, 0.0
        %v1864 = vld [vmem:[%s14] sm:$0xff]
        %v1865 = vld [vmem:[%s14 + $0x8] sm:$0xff]
        %v1866 = vld [vmem:[%s14 + $0x10] sm:$0xff]
        %v1867 = vld [vmem:[%s14 + $0x18] sm:$0xff]
        %v1868 = vld [vmem:[%s14 + $0x20] sm:$0xff]
        %v1869 = vld [vmem:[%s14 + $0x28] sm:$0xff]
        %v1870 = vld [vmem:[%s14 + $0x30] sm:$0xff]
        %v1871 = vld [vmem:[%s14 + $0x38] sm:$0xff]
        %v1872 = vld [vmem:[%s15] sm:$0x1]
        %v1874 = vlaneseq
        %v1875 = vshrl.u32 %v1874, 7
        %v1876 = vsub.s32 0, %v1875
        %v1877 = vrot.slane %v1872, %v1876
        %vm1879 = vcmask 523264
        %v1881 = vsel %vm1879, %v1862, 0
        %v1884 = vsel %vm1879, %v1863, 0
        %1886 = vmatprep.subr.mxu0 0.0
        %1887 = vmatpush1.msra.mxu0 0.0
        %1888 = vmatprep.subr.mxu0 0.0
        %1889 = vmatpush1.msra.mxu0 0.0
        %1890 = vmatprep.subr.mxu0 0.0
        %1891 = vmatpush1.msra.mxu0 0.0
        %1892 = vmatprep.subr.mxu0 0.0
        %1893 = vmatpush1.msra.mxu0 0.0
        %1894 = vmatprep.subr.mxu0 0.0
        %1895 = vmatpush1.msra.mxu0 0.0
        %1896 = vmatprep.subr.mxu0 0.0
        %1897 = vmatpush1.msra.mxu0 0.0
        %1898 = vmatprep.subr.mxu0 0.0
        %1899 = vmatpush1.msra.mxu0 0.0
        %1900 = vmatprep.subr.mxu0 0.0
        %1901 = vmatpush1.msra.mxu0 0.0
        %1902 = vmatprep.subr.mxu0 0.0
        %1903 = vmatpush1.msra.mxu0 %v1871
        %1904 = vmatprep.subr.mxu0 0.0
        %1905 = vmatpush1.msra.mxu0 %v1870
        %1906 = vmatprep.subr.mxu0 0.0
        %1907 = vmatpush1.msra.mxu0 %v1869
        %1908 = vmatprep.subr.mxu0 0.0
        %1909 = vmatpush1.msra.mxu0 %v1868
        %1910 = vmatprep.subr.mxu0 0.0
        %1911 = vmatpush1.msra.mxu0 %v1867
        %1912 = vmatprep.subr.mxu0 0.0
        %1913 = vmatpush1.msra.mxu0 %v1866
        %1914 = vmatprep.subr.mxu0 0.0
        %1915 = vmatpush1.msra.mxu0 %v1865
        %1916 = vmatprep.subr.mxu0 0.0
        %1917 = vmatpush1.msra.mxu0 %v1864
        %1918 = vmatprep.subr.mxu0 0.0
        %1919 = vmatpush2.msra.mxu0 0.0
        %1920 = vmatprep.subr.mxu0 0.0
        %1921 = vmatpush2.msra.mxu0 0.0
        %1922 = vmatprep.subr.mxu0 0.0
        %1923 = vmatpush2.msra.mxu0 0.0
        %1924 = vmatprep.subr.mxu0 0.0
        %1925 = vmatpush2.msra.mxu0 0.0
        %1926 = vmatprep.subr.mxu0 0.0
        %1927 = vmatpush2.msra.mxu0 0.0
        %1928 = vmatprep.subr.mxu0 0.0
        %1929 = vmatpush2.msra.mxu0 0.0
        %1930 = vmatprep.subr.mxu0 0.0
        %1931 = vmatpush2.msra.mxu0 0.0
        %1932 = vmatprep.subr.mxu0 0.0
        %1933 = vmatpush2.msra.mxu0 0.0
        %1934 = vmatprep.subr.mxu0 0.0
        %1935 = vmatpush2.msra.mxu0 0.0
        %1936 = vmatprep.subr.mxu0 0.0
        %1937 = vmatpush2.msra.mxu0 0.0
        %1938 = vmatprep.subr.mxu0 0.0
        %1939 = vmatpush2.msra.mxu0 0.0
        %1940 = vmatprep.subr.mxu0 0.0
        %1941 = vmatpush2.msra.mxu0 0.0
        %1942 = vmatprep.subr.mxu0 0.0
        %1943 = vmatpush2.msra.mxu0 0.0
        %1944 = vmatprep.subr.mxu0 0.0
        %1945 = vmatpush2.msra.mxu0 0.0
        %1946 = vmatprep.subr.mxu0 0.0
        %1947 = vmatpush2.msra.mxu0 0.0
        %1948 = vmatprep.subr.mxu0 0.0
        %1949 = vmatpush2.msra.mxu0 0.0
        %1950 = vmatprep.mubr.f32.mxu0 0.0
        %1951 = vmatmul.mubr.f32.gmra.mxu0 %v1881
        %v1952 = vpop.f32.mrf.mxu0
        %v1953 = vadd.f32 %v1877, %v1952
        %v1954 = vpop.f32.mrf.mxu0
        %1955 = vmatprep.mubr.f32.mxu0 0.0
        %1956 = vmatmul.mubr.f32.gmra.mxu0 %v1884
        %v1957 = vpop.f32.mrf.mxu0
        %v1958 = vadd.f32 %v1877, %v1957
        %v1959 = vpop.f32.mrf.mxu0
        %1960 = vdwg.mxu0
        %v1961 = vadd.f32 %v1768, %v1953
        %v1962 = vadd.f32 %v1769, %v1958
        %v1963 = vsel %vm644, %v1961, 0.0
        %1964 = vadd.xlane.f32.xlu0 %v1963
        %v1965 = vpop.xlane.xlu0 %1964
        %v1966 = vsel %vm644, %v1962, 0.0
        %1967 = vadd.xlane.f32.xlu0 %v1966
        %v1968 = vpop.xlane.xlu0 %1967
        %v1969 = vmul.f32 %v1965, %v1731
        %v1970 = vmul.f32 %v1968, %v1731
        %v1971 = vsub.f32 %v1961, %v1969
        %v1972 = vsub.f32 %v1962, %v1970
        %v1973 = vmul.f32 %v1971, %v1971
        %v1974 = vmul.f32 %v1972, %v1972
        %v1975 = vsel %vm644, %v1973, 0.0
        %1976 = vadd.xlane.f32.xlu0 %v1975
        %v1977 = vpop.xlane.xlu0 %1976
        %v1978 = vsel %vm644, %v1974, 0.0
        %1979 = vadd.xlane.f32.xlu0 %v1978
        %v1980 = vpop.xlane.xlu0 %1979
        %v1981 = vmul.f32 %v1977, %v1731
        %v1982 = vmul.f32 %v1980, %v1731
        %v1983 = vadd.f32 %v1981, 1e-05
        %v1984 = vadd.f32 %v1982, 1e-05
        %v1985 = vrsqrt.pop %v1983
        %v1986 = vrsqrt.pop %v1984
        %v1987 = vmul.f32 %v1971, %v1985
        %v1988 = vmul.f32 %v1972, %v1986
        %v1989 = vld [vmem:[%s16] sm:$0x1]
        %v1991 = vlaneseq
        %v1992 = vshrl.u32 %v1991, 7
        %v1993 = vsub.s32 0, %v1992
        %v1994 = vrot.slane %v1989, %v1993
        %v1996 = vmul.f32 %v1987, %v1994
        %v1997 = vmul.f32 %v1988, %v1994
        %v1998 = vld [vmem:[%s17] sm:$0x1]
        %v2000 = vlaneseq
        %v2001 = vshrl.u32 %v2000, 7
        %v2002 = vsub.s32 0, %v2001
        %v2003 = vrot.slane %v1998, %v2002
        %v2005 = vadd.f32 %v1996, %v2003
        %v2006 = vadd.f32 %v1997, %v2003
        %v2007 = vsel %vm644, %v2005, 0.0
        %v2008 = vsel %vm644, %v2006, 0.0
        %v2009 = vadd.f32 %v2007, %v2008
        %v2010 = vrot.slane %v2009, 4
        %v2011 = vadd.f32 %v2009, %v2010
        %v2012 = vrot.slane %v2011, 2
        %v2013 = vadd.f32 %v2011, %v2012
        %v2014 = vrot.slane %v2013, 1
        %v2015 = vadd.f32 %v2013, %v2014
        %v2016 = vrcp.pop 16.0
        %v2017 = vmul.f32 %v2015, %v2016
        %v2018 = vld [vmem:[%s18] sm:$0xff]
        %v2019 = vld [vmem:[%s18 + $0x8] sm:$0xff]
        %v2020 = vld [vmem:[%s18 + $0x10] sm:$0xff]
        %v2021 = vld [vmem:[%s18 + $0x18] sm:$0xff]
        %v2022 = vld [vmem:[%s19] sm:$0x1]
        %v2024 = vsel %vm644, %v2017, 0
        %2026 = vmatprep.subr.mxu0 0.0
        %2027 = vmatpush1.msra.mxu0 0.0
        %2028 = vmatprep.subr.mxu0 0.0
        %2029 = vmatpush1.msra.mxu0 0.0
        %2030 = vmatprep.subr.mxu0 0.0
        %2031 = vmatpush1.msra.mxu0 0.0
        %2032 = vmatprep.subr.mxu0 0.0
        %2033 = vmatpush1.msra.mxu0 0.0
        %2034 = vmatprep.subr.mxu0 0.0
        %2035 = vmatpush1.msra.mxu0 0.0
        %2036 = vmatprep.subr.mxu0 0.0
        %2037 = vmatpush1.msra.mxu0 0.0
        %2038 = vmatprep.subr.mxu0 0.0
        %2039 = vmatpush1.msra.mxu0 0.0
        %2040 = vmatprep.subr.mxu0 0.0
        %2041 = vmatpush1.msra.mxu0 0.0
        %2042 = vmatprep.subr.mxu0 0.0
        %2043 = vmatpush1.msra.mxu0 0.0
        %2044 = vmatprep.subr.mxu0 0.0
        %2045 = vmatpush1.msra.mxu0 0.0
        %2046 = vmatprep.subr.mxu0 0.0
        %2047 = vmatpush1.msra.mxu0 0.0
        %2048 = vmatprep.subr.mxu0 0.0
        %2049 = vmatpush1.msra.mxu0 0.0
        %2050 = vmatprep.subr.mxu0 0.0
        %2051 = vmatpush1.msra.mxu0 %v2021
        %2052 = vmatprep.subr.mxu0 0.0
        %2053 = vmatpush1.msra.mxu0 %v2020
        %2054 = vmatprep.subr.mxu0 0.0
        %2055 = vmatpush1.msra.mxu0 %v2019
        %2056 = vmatprep.subr.mxu0 0.0
        %2057 = vmatpush1.msra.mxu0 %v2018
        %2058 = vmatprep.subr.mxu0 0.0
        %2059 = vmatpush2.msra.mxu0 0.0
        %2060 = vmatprep.subr.mxu0 0.0
        %2061 = vmatpush2.msra.mxu0 0.0
        %2062 = vmatprep.subr.mxu0 0.0
        %2063 = vmatpush2.msra.mxu0 0.0
        %2064 = vmatprep.subr.mxu0 0.0
        %2065 = vmatpush2.msra.mxu0 0.0
        %2066 = vmatprep.subr.mxu0 0.0
        %2067 = vmatpush2.msra.mxu0 0.0
        %2068 = vmatprep.subr.mxu0 0.0
        %2069 = vmatpush2.msra.mxu0 0.0
        %2070 = vmatprep.subr.mxu0 0.0
        %2071 = vmatpush2.msra.mxu0 0.0
        %2072 = vmatprep.subr.mxu0 0.0
        %2073 = vmatpush2.msra.mxu0 0.0
        %2074 = vmatprep.subr.mxu0 0.0
        %2075 = vmatpush2.msra.mxu0 0.0
        %2076 = vmatprep.subr.mxu0 0.0
        %2077 = vmatpush2.msra.mxu0 0.0
        %2078 = vmatprep.subr.mxu0 0.0
        %2079 = vmatpush2.msra.mxu0 0.0
        %2080 = vmatprep.subr.mxu0 0.0
        %2081 = vmatpush2.msra.mxu0 0.0
        %2082 = vmatprep.subr.mxu0 0.0
        %2083 = vmatpush2.msra.mxu0 0.0
        %2084 = vmatprep.subr.mxu0 0.0
        %2085 = vmatpush2.msra.mxu0 0.0
        %2086 = vmatprep.subr.mxu0 0.0
        %2087 = vmatpush2.msra.mxu0 0.0
        %2088 = vmatprep.subr.mxu0 0.0
        %2089 = vmatpush2.msra.mxu0 0.0
        %2090 = vmatprep.mubr.f32.mxu0 0.0
        %2091 = vmatmul.mubr.f32.gmra.mxu0 %v2024
        %v2092 = vpop.f32.mrf.mxu0
        %v2093 = vadd.f32 %v2022, %v2092
        %v2094 = vpop.f32.mrf.mxu0
        %2095 = vdwg.mxu0
        %v2096 = vxor.u32 %v2093, 2147483648
        %v2097 = vmul.f32 %v2096, 1.442695
        %v2098 = vpow.pop %v2097
        %v2099 = vadd.f32 %v2098, 1.0
        %v2100 = vrcp.pop %v2099
        %v2101 = vmul.f32 1.0, %v2100
        %vm2102 = vcmask 24576
        %2103 = vst.msk [vmem:[%s621] sm:$0x1] %vm2102, %v2101
        %s2104 = sand.u32 %s467, 1
        %s2105 = scalar_lea.sflag [#allocation3], %s2104
        %s2106 = sand.u32 %s467, 1
        %s2107 = scalar_lea.vmem [#allocation2], %s2106
        // Predicated region
        $region101: #{tpu_custom_call.1} parent=99 // pred_check
          %p2108 = pneg %p477
        $region102: #{tpu_custom_call.1} parent=99 // pred_check_branch
          %2110 = sbr.rel (%p2108) target = $region104
        $region103: #{tpu_custom_call.1} parent=99 // pred_region
          %s2112 = ssub.s32 16, 16
          %2113 = vsyncadd %s2105, %s2112
          %s2114 = smul.addr %s34, 16
          %s2115 = scalar_lea.hbm %s20, %s2114
          %s2117 = sshll.u32 %s2107, 4
          %s2118 = int_to_ptr.vmem [resolvable:$true] %s2117
          %2120 = dma.vmem_to_hbm [thread:$0]  %s2118, 16, %s2115, %s2105
        $region104: #{tpu_custom_call.1} parent=99 // pred_fallthru
          _
      $region100: #{tpu_custom_call.1} parent=5 // pred_fallthru
        _
      %p2121 = scmp.le.s32.totalorder 2, %s29
      // Predicated region
      $region105: #{tpu_custom_call.1} parent=5 // pred_check
        %p2122 = pneg %p2121
      $region106: #{tpu_custom_call.1} parent=5 // pred_check_branch
        %2124 = sbr.rel (%p2122) target = $region108
      $region107: #{tpu_custom_call.1} parent=5 // pred_region
        %s2125 = ssub.s32 %s29, 2
        // Predicated region
        $region109: #{tpu_custom_call.1} parent=107 // pred_check
          %p2126 = pneg %p483
        $region110: #{tpu_custom_call.1} parent=107 // pred_check_branch
          %2128 = sbr.rel (%p2126) target = $region112
        $region111: #{tpu_custom_call.1} parent=107 // pred_region
          %s2129 = sand.u32 %s468, 1
          %s2130 = scalar_lea.sflag [#allocation3], %s2129
          %s2131 = sand.u32 %s468, 1
          %s2132 = scalar_lea.vmem [#allocation2], %s2131
          %2133 = dma.done %s2130, 16
        $region112: #{tpu_custom_call.1} parent=107 // pred_fallthru
          _
      $region108: #{tpu_custom_call.1} parent=5 // pred_fallthru
        _
    $region6: #{tpu_custom_call.1} parent=1 // loop_footer
      %s33 = sadd.s32 1, %s29
    $region7: #{tpu_custom_call.1} parent=1 // loop_footer_branch
      %28 = sbr.rel target = $region3
    $region8: #{tpu_custom_call.1} parent=1 // loop_exit
      _
    %2134 = vsyncpa [#allocation3], 1
    %s2135 = scalar_lea.sflag [#allocation3], 1
    %2136 = vsyncpa %s2135, 1

</llo_original>
